<compile_context>
chip_gen: v7x
topology: tpu7x:2x2x1
jax: 0.10.0
libtpu: 0.0.40
codegen_flags: <defaults>
</compile_context>

<pallas_src>
import random

import jax
import jax.numpy as jnp
from jax.experimental import pallas as pl
from jax.experimental.pallas import tpu as pltpu

INPUT_DIM = 32    # src vocab
OUTPUT_DIM = 32   # trg vocab (decoder.output_dim)
ENC_EMB = 16
DEC_EMB = 16
ENC_HID = 32
DEC_HID = 32
SRC_LEN = 8
TRG_LEN = 8
BATCH = 2
VPAD = 128        # lane-padded logit width (argmax workspace + lane-dense stores)


# ----------------------------- Pallas kernels -----------------------------

def enc_gru_kernel(gi_ref, whh_ref, bhh_ref, fwd_ref, bwd_ref, hfin_ref, h_scr):
    """One recurrence step of the bidirectional encoder GRU.

    Both directions are packed side by side: hidden is [B, 2H] = [h_fwd | h_bwd],
    gi (input projection, precomputed outside) and W_hh_blk are laid out with
    gate columns [r_f r_b | z_f z_b | n_f n_b] so the gate math is identical to
    a single GRU of width 2H.
    """
    t = pl.program_id(0)

    @pl.when(t == 0)
    def _():
        h_scr[...] = jnp.zeros_like(h_scr)

    h = h_scr[...]                                   # [B, 2H]
    gi = gi_ref[...]                                 # [B, 6H]  (includes b_ih)
    gh = jnp.dot(h, whh_ref[...], preferred_element_type=jnp.float32) + bhh_ref[...]

    H2 = h.shape[-1]
    r = jax.nn.sigmoid(gi[:, :H2] + gh[:, :H2])
    z = jax.nn.sigmoid(gi[:, H2:2 * H2] + gh[:, H2:2 * H2])
    n = jnp.tanh(gi[:, 2 * H2:] + r * gh[:, 2 * H2:])
    h_new = (1.0 - z) * n + z * h
    h_scr[...] = h_new

    H = H2 // 2
    fwd_ref[...] = h_new[:, :H]                      # forward state at position t
    bwd_ref[...] = h_new[:, H:]                      # backward state at position S-1-t
    hfin_ref[...] = h_new                            # last write = [h_f_final | h_b_final]


def dec_step_kernel(tf_ref, trg1h_ref, h0_ref, enc_ref, et_ref, wah_ref, v_ref,
                    emb_ref, wie_ref, wiw_ref, whh_ref, bih_ref, bhh_ref,
                    foh_ref, fow_ref, foe_ref, fob_ref,
                    out_ref, h_scr, inp_scr):
    """One decoder timestep: concat-attention + GRU cell + fc_out + greedy /
    teacher-forced next-input selection. Hidden and current one-hot input live
    in VMEM scratch across the grid."""
    i = pl.program_id(0)

    @pl.when(i == 0)
    def _():
        h_scr[...] = h0_ref[...]
        inp_scr[...] = trg1h_ref[0]                  # one-hot(trg[0])

    h = h_scr[...]                                   # [B, Hd]
    inp = inp_scr[...]                               # [B, VPAD] one-hot
    emb = jnp.dot(inp, emb_ref[...], preferred_element_type=jnp.float32)   # [B, DEC_EMB]

    # ---- concat attention (enc projection + bias precomputed in et_ref) ----
    h_term = jnp.dot(h, wah_ref[...], preferred_element_type=jnp.float32)  # [B, Hd]
    energy = jnp.tanh(h_term[:, None, :] + et_ref[...])                    # [B, S, Hd]
    scores = jnp.sum(energy * v_ref[...], axis=-1)                         # [B, S]
    scores = scores - jnp.max(scores, axis=-1, keepdims=True)
    ex = jnp.exp(scores)
    a = ex * pl.reciprocal(jnp.sum(ex, axis=-1, keepdims=True), approx=True)
    weighted = jnp.sum(a[:, :, None] * enc_ref[...], axis=1)               # [B, 2*He]

    # ---- GRU cell (rnn_input = [embedded | weighted], matmul split => no concat) ----
    gi = (jnp.dot(emb, wie_ref[...], preferred_element_type=jnp.float32)
          + jnp.dot(weighted, wiw_ref[...], preferred_element_type=jnp.float32)
          + bih_ref[...])
    gh = jnp.dot(h, whh_ref[...], preferred_element_type=jnp.float32) + bhh_ref[...]
    Hd = h.shape[-1]
    r = jax.nn.sigmoid(gi[:, :Hd] + gh[:, :Hd])
    z = jax.nn.sigmoid(gi[:, Hd:2 * Hd] + gh[:, Hd:2 * Hd])
    n = jnp.tanh(gi[:, 2 * Hd:] + r * gh[:, 2 * Hd:])
    h_new = (1.0 - z) * n + z * h
    h_scr[...] = h_new

    # ---- fc_out on [output | weighted | embedded], lane-padded to VPAD ----
    logits = (jnp.dot(h_new, foh_ref[...], preferred_element_type=jnp.float32)
              + jnp.dot(weighted, fow_ref[...], preferred_element_type=jnp.float32)
              + jnp.dot(emb, foe_ref[...], preferred_element_type=jnp.float32)
              + fob_ref[...])                                              # [B, VPAD]
    out_ref[...] = logits

    # ---- next input: teacher forcing vs greedy argmax (first-max tie-break) ----
    mx = jnp.max(logits, axis=-1, keepdims=True)
    lane = jax.lax.broadcasted_iota(jnp.int32, logits.shape, 1)
    idx = jnp.min(jnp.where(logits >= mx, lane, VPAD), axis=-1, keepdims=True)
    top1_onehot = (lane == idx).astype(jnp.float32)                        # [B, VPAD]
    tf_f = tf_ref[i].astype(jnp.float32)                                   # 0.0 or 1.0
    inp_scr[...] = tf_f * trg1h_ref[i + 1] + (1.0 - tf_f) * top1_onehot


# ----------------------------- Pallas wrappers -----------------------------

def encoder_recurrence(gi_cat, whh_blk, bhh_blk):
    S, B, G = gi_cat.shape
    H2 = whh_blk.shape[0]
    H = H2 // 2
    grid_spec = pltpu.PrefetchScalarGridSpec(
        num_scalar_prefetch=0, grid=(S,),
        in_specs=[
            pl.BlockSpec((None, B, G), lambda t: (t, 0, 0)),
            pl.BlockSpec((H2, G), lambda t: (0, 0)),
            pl.BlockSpec((1, G), lambda t: (0, 0)),
        ],
        out_specs=[
            pl.BlockSpec((None, B, H), lambda t: (t, 0, 0)),
            pl.BlockSpec((None, B, H), lambda t: (S - 1 - t, 0, 0)),
            pl.BlockSpec((B, H2), lambda t: (0, 0)),
        ],
        scratch_shapes=[pltpu.VMEM((B, H2), jnp.float32)],
    )
    return pl.pallas_call(
        enc_gru_kernel,
        grid_spec=grid_spec,
        out_shape=(jax.ShapeDtypeStruct((S, B, H), jnp.float32),
                   jax.ShapeDtypeStruct((S, B, H), jnp.float32),
                   jax.ShapeDtypeStruct((B, H2), jnp.float32)),
        compiler_params=pltpu.CompilerParams(dimension_semantics=("arbitrary",)),
    )(gi_cat, whh_blk, bhh_blk)


def decoder_loop(tf_flags, trg1h, hidden0, enc_bse, e_term, pp):
    T, B, _ = trg1h.shape
    S, E2 = enc_bse.shape[1], enc_bse.shape[2]
    Hd = hidden0.shape[1]
    steps = T - 1

    def const2(shape):
        return pl.BlockSpec(shape, lambda i, tf: (0, 0))

    def const3(shape):
        return pl.BlockSpec(shape, lambda i, tf: (0, 0, 0))

    grid_spec = pltpu.PrefetchScalarGridSpec(
        num_scalar_prefetch=1, grid=(steps,),
        in_specs=[
            const3((T, B, VPAD)),                  # trg one-hot
            const2((B, Hd)),                       # initial hidden
            const3((B, S, E2)),                    # encoder outputs (batch-first)
            const3((B, S, Hd)),                    # e_term = enc @ attn_we + attn_b
            const2((Hd, Hd)),                      # attn_wh
            const2((1, Hd)),                       # attn_v
            const2((VPAD, DEC_EMB)),               # dec embedding (row-padded)
            const2((DEC_EMB, 3 * Hd)),             # dec W_ih (embedded rows)
            const2((E2, 3 * Hd)),                  # dec W_ih (weighted rows)
            const2((Hd, 3 * Hd)),                  # dec W_hh
            const2((1, 3 * Hd)),                   # dec b_ih
            const2((1, 3 * Hd)),                   # dec b_hh
            const2((Hd, VPAD)),                    # fc_out (output rows, lane-padded)
            const2((E2, VPAD)),                    # fc_out (weighted rows)
            const2((DEC_EMB, VPAD)),               # fc_out (embedded rows)
            const2((1, VPAD)),                     # fc_out bias (padded with -1e30)
        ],
        out_specs=pl.BlockSpec((None, B, VPAD), lambda i, tf: (i, 0, 0)),
        scratch_shapes=[pltpu.VMEM((B, Hd), jnp.float32),
                        pltpu.VMEM((B, VPAD), jnp.float32)],
    )
    return pl.pallas_call(
        dec_step_kernel,
        grid_spec=grid_spec,
        out_shape=jax.ShapeDtypeStruct((steps, B, VPAD), jnp.float32),
        compiler_params=pltpu.CompilerParams(dimension_semantics=("arbitrary",)),
    )(tf_flags, trg1h, hidden0, enc_bse, e_term,
      pp['attn_wh'], pp['attn_v'], pp['dec_emb_pad'],
      pp['dec_wih_e'], pp['dec_wih_w'], pp['dec_whh'], pp['dec_bih'], pp['dec_bhh'],
      pp['fco_h'], pp['fco_w'], pp['fco_e'], pp['fco_b'])


# ----------------------------- Model (forward) -----------------------------

@jax.jit
def seq2seq_forward(pp, src, trg, tf_flags):
    H = ENC_HID
    # Encoder: embedding + batched (all-timestep) input projections in one matmul
    emb = jnp.take(pp['enc_emb'], src, axis=0)                        # [S, B, E]
    gi_f = jnp.einsum('sbe,eg->sbg', emb, pp['enc_wih_f']) + pp['enc_bih_f']
    gi_b = jnp.einsum('sbe,eg->sbg', emb[::-1], pp['enc_wih_b']) + pp['enc_bih_b']
    gi_cat = jnp.concatenate(
        [gi_f[..., 0:H], gi_b[..., 0:H],
         gi_f[..., H:2 * H], gi_b[..., H:2 * H],
         gi_f[..., 2 * H:], gi_b[..., 2 * H:]], axis=-1)              # [S, B, 6H]

    fwd, bwd, hfin = encoder_recurrence(gi_cat, pp['enc_whh_blk'], pp['enc_bhh_blk'])
    enc_bse = jnp.transpose(jnp.concatenate([fwd, bwd], axis=-1), (1, 0, 2))  # [B,S,2H]
    hidden0 = jnp.tanh(hfin @ pp['enc_fc_w'] + pp['enc_fc_b'])        # [B, DEC_HID]

    # Step-invariant attention projection (hoisted out of the decoder loop)
    e_term = jnp.einsum('bse,ed->bsd', enc_bse, pp['attn_we']) + pp['attn_b']

    trg1h = jax.nn.one_hot(trg, VPAD, dtype=jnp.float32)              # [T, B, VPAD]
    dec_out = decoder_loop(tf_flags, trg1h, hidden0, enc_bse, e_term, pp)

    outputs = jnp.concatenate(
        [jnp.zeros((1, trg.shape[1], OUTPUT_DIM), jnp.float32),       # outputs[0] = 0
         dec_out[:, :, :OUTPUT_DIM]], axis=0)
    return outputs                                                    # [T, B, OUTPUT_DIM]


# ----------------------------- Parameters -----------------------------

def init_params(key):
    ks = jax.random.split(key, 22)

    def w(k, shape, scale=0.1):
        return (scale * jax.random.normal(k, shape)).astype(jnp.float32)

    return {
        # encoder
        'enc_emb':   w(ks[0], (INPUT_DIM, ENC_EMB)),
        'enc_wih_f': w(ks[1], (ENC_EMB, 3 * ENC_HID)),
        'enc_whh_f': w(ks[2], (ENC_HID, 3 * ENC_HID)),
        'enc_bih_f': w(ks[3], (1, 3 * ENC_HID)),
        'enc_bhh_f': w(ks[4], (1, 3 * ENC_HID)),
        'enc_wih_b': w(ks[5], (ENC_EMB, 3 * ENC_HID)),
        'enc_whh_b': w(ks[6], (ENC_HID, 3 * ENC_HID)),
        'enc_bih_b': w(ks[7], (1, 3 * ENC_HID)),
        'enc_bhh_b': w(ks[8], (1, 3 * ENC_HID)),
        'enc_fc_w':  w(ks[9], (2 * ENC_HID, DEC_HID)),
        'enc_fc_b':  w(ks[10], (1, DEC_HID)),
        # attention (attn weight split into hidden-part and enc-part of the concat)
        'attn_wh':   w(ks[11], (DEC_HID, DEC_HID)),
        'attn_we':   w(ks[12], (2 * ENC_HID, DEC_HID)),
        'attn_b':    w(ks[13], (1, DEC_HID)),
        'attn_v':    w(ks[14], (1, DEC_HID)),     # v: Linear(DEC_HID, 1, bias=False)
        # decoder
        'dec_emb':   w(ks[15], (OUTPUT_DIM, DEC_EMB)),
        'dec_wih':   w(ks[16], (DEC_EMB + 2 * ENC_HID, 3 * DEC_HID)),
        'dec_whh':   w(ks[17], (DEC_HID, 3 * DEC_HID)),
        'dec_bih':   w(ks[18], (1, 3 * DEC_HID)),
        'dec_bhh':   w(ks[19], (1, 3 * DEC_HID)),
        'fc_out_w':  w(ks[20], (2 * ENC_HID + DEC_HID + DEC_EMB, OUTPUT_DIM)),
        'fc_out_b':  w(ks[21], (1, OUTPUT_DIM)),
    }


def prepare_params(p):
    """Derive fused/padded weight layouts (done once, outside the hot path)."""
    H = ENC_HID
    f, b = p['enc_whh_f'], p['enc_whh_b']
    whh_blk = jnp.zeros((2 * H, 6 * H), jnp.float32)
    whh_blk = whh_blk.at[:H, 0 * H:1 * H].set(f[:, 0:H])        # r (fwd)
    whh_blk = whh_blk.at[H:, 1 * H:2 * H].set(b[:, 0:H])        # r (bwd)
    whh_blk = whh_blk.at[:H, 2 * H:3 * H].set(f[:, H:2 * H])    # z (fwd)
    whh_blk = whh_blk.at[H:, 3 * H:4 * H].set(b[:, H:2 * H])    # z (bwd)
    whh_blk = whh_blk.at[:H, 4 * H:5 * H].set(f[:, 2 * H:])     # n (fwd)
    whh_blk = whh_blk.at[H:, 5 * H:6 * H].set(b[:, 2 * H:])     # n (bwd)
    bhh_blk = jnp.concatenate(
        [p['enc_bhh_f'][:, 0:H], p['enc_bhh_b'][:, 0:H],
         p['enc_bhh_f'][:, H:2 * H], p['enc_bhh_b'][:, H:2 * H],
         p['enc_bhh_f'][:, 2 * H:], p['enc_bhh_b'][:, 2 * H:]], axis=1)

    dec_emb_pad = jnp.zeros((VPAD, DEC_EMB), jnp.float32).at[:OUTPUT_DIM].set(p['dec_emb'])

    fco = p['fc_out_w']
    foh = jnp.zeros((DEC_HID, VPAD), jnp.float32).at[:, :OUTPUT_DIM].set(fco[:DEC_HID])
    fow = jnp.zeros((2 * ENC_HID, VPAD), jnp.float32).at[:, :OUTPUT_DIM].set(
        fco[DEC_HID:DEC_HID + 2 * ENC_HID])
    foe = jnp.zeros((DEC_EMB, VPAD), jnp.float32).at[:, :OUTPUT_DIM].set(
        fco[DEC_HID + 2 * ENC_HID:])
    fob = jnp.full((1, VPAD), -1e30, jnp.float32).at[:, :OUTPUT_DIM].set(p['fc_out_b'])

    pp = dict(p)
    pp.update(enc_whh_blk=whh_blk, enc_bhh_blk=bhh_blk,
              dec_emb_pad=dec_emb_pad,
              dec_wih_e=p['dec_wih'][:DEC_EMB], dec_wih_w=p['dec_wih'][DEC_EMB:],
              fco_h=foh, fco_w=fow, fco_e=foe, fco_b=fob)
    return pp


if __name__ == "__main__":
    key = jax.random.PRNGKey(0)
    pkey, skey, tkey = jax.random.split(key, 3)
    params = prepare_params(init_params(pkey))

    src = jax.random.randint(skey, (SRC_LEN, BATCH), 0, INPUT_DIM, dtype=jnp.int32)
    trg = jax.random.randint(tkey, (TRG_LEN, BATCH), 0, OUTPUT_DIM, dtype=jnp.int32)

    # Teacher-forcing coin flips (PyTorch does random.random() per decoder step).
    # Precomputed on host so the jitted trace is stable; passed to the kernel via SMEM.
    teacher_forcing_ratio = 0.5
    random.seed(0)
    tf_flags = jnp.array(
        [1 if random.random() < teacher_forcing_ratio else 0 for _ in range(TRG_LEN - 1)],
        dtype=jnp.int32)

    outputs = seq2seq_forward(params, src, trg, tf_flags)
    outputs = jax.block_until_ready(outputs)
    assert outputs.shape == (TRG_LEN, BATCH, OUTPUT_DIM)
    assert bool(jnp.all(jnp.isfinite(outputs)))
    print("KERNEL_OK")
</pallas_src>

<mosaic_0001>
module attributes {stable_mosaic.version = 11 : i64} {
  func.func @enc_gru_kernel(%arg0: i32, %arg1: memref<1x2x192xf32, #tpu.memory_space<vmem>>, %arg2: memref<64x192xf32, #tpu.memory_space<vmem>>, %arg3: memref<1x192xf32, #tpu.memory_space<vmem>>, %arg4: memref<1x2x32xf32, #tpu.memory_space<vmem>>, %arg5: memref<1x2x32xf32, #tpu.memory_space<vmem>>, %arg6: memref<2x64xf32, #tpu.memory_space<vmem>>, %arg7: memref<2x64xf32, #tpu.memory_space<vmem>>) attributes {dimension_semantics = [#tpu.dimension_semantics<arbitrary>], iteration_bounds = array<i64: 8>, scalar_prefetch = 0 : i64, scratch_operands = 1 : i64, tpu.core_type = #tpu.core_type<tc>, window_params = [{transform_indices = @transform_0, window_bounds = array<i64: 1, 2, 192>}, {pipeline_mode = #tpu.pipeline_mode<synchronous>, transform_indices = @transform_1, window_bounds = array<i64: 64, 192>}, {pipeline_mode = #tpu.pipeline_mode<synchronous>, transform_indices = @transform_2, window_bounds = array<i64: 1, 192>}, {transform_indices = @transform_3, window_bounds = array<i64: 1, 2, 32>}, {transform_indices = @transform_4, window_bounds = array<i64: 1, 2, 32>}, {pipeline_mode = #tpu.pipeline_mode<synchronous>, transform_indices = @transform_5, window_bounds = array<i64: 2, 64>}]} {
    %c0_i32 = arith.constant 0 : i32
    %0 = arith.cmpi eq, %arg0, %c0_i32 : i32
    %1 = arith.extui %0 : i1 to i32
    %c0_i32_0 = arith.constant 0 : i32
    %2 = arith.cmpi ne, %1, %c0_i32_0 : i32
    scf.if %2 {
      %cst_22 = arith.constant 0.000000e+00 : f32
      %47 = vector.broadcast %cst_22 : f32 to vector<2x64xf32>
      %c0_23 = arith.constant 0 : index
      %c0_24 = arith.constant 0 : index
      %48 = vector.load %arg7[%c0_23, %c0_24] : memref<2x64xf32, #tpu.memory_space<vmem>>, vector<2x64xf32>
      tpu.vector_store %arg7[%c0_23, %c0_24], %47 {strides = array<i32>} : memref<2x64xf32, #tpu.memory_space<vmem>>, vector<2x64xf32>,
    } else {
    }
    %c0 = arith.constant 0 : index
    %c0_1 = arith.constant 0 : index
    %3 = vector.load %arg7[%c0, %c0_1] : memref<2x64xf32, #tpu.memory_space<vmem>>, vector<2x64xf32>
    %c0_2 = arith.constant 0 : index
    %c0_3 = arith.constant 0 : index
    %c0_4 = arith.constant 0 : index
    %4 = vector.load %arg1[%c0_2, %c0_3, %c0_4] : memref<1x2x192xf32, #tpu.memory_space<vmem>>, vector<1x2x192xf32>
    %5 = vector.shape_cast %4 : vector<1x2x192xf32> to vector<2x192xf32>
    %c0_5 = arith.constant 0 : index
    %c0_6 = arith.constant 0 : index
    %6 = vector.load %arg2[%c0_5, %c0_6] : memref<64x192xf32, #tpu.memory_space<vmem>>, vector<64x192xf32>
    %cst = arith.constant dense<0.000000e+00> : vector<2x192xf32>
    %7 = tpu.matmul %3, %6, %cst {dimension_numbers = #tpu.dot_dimension_numbers<[1], [0], [0], [1], [0, 0, 1, 1], [], []>} : vector<2x64xf32>, vector<64x192xf32>, vector<2x192xf32> -> vector<2x192xf32>
    %c0_7 = arith.constant 0 : index
    %c0_8 = arith.constant 0 : index
    %8 = vector.load %arg3[%c0_7, %c0_8] : memref<1x192xf32, #tpu.memory_space<vmem>>, vector<1x192xf32>
    %9 = vector.broadcast %8 : vector<1x192xf32> to vector<2x192xf32>
    %10 = arith.addf %7, %9 : vector<2x192xf32>
    %11 = vector.extract_strided_slice %5 {offsets = [0, 0], sizes = [2, 64], strides = [1, 1]} : vector<2x192xf32> to vector<2x64xf32>
    %12 = vector.extract_strided_slice %10 {offsets = [0, 0], sizes = [2, 64], strides = [1, 1]} : vector<2x192xf32> to vector<2x64xf32>
    %13 = arith.addf %11, %12 : vector<2x64xf32>
    %14 = arith.negf %13 : vector<2x64xf32>
    %15 = math.exp %14 : vector<2x64xf32>
    %cst_9 = arith.constant 1.000000e+00 : f32
    %16 = vector.broadcast %cst_9 : f32 to vector<2x64xf32>
    %17 = arith.addf %16, %15 : vector<2x64xf32>
    %18 = arith.divf %16, %17 : vector<2x64xf32>
    %19 = vector.extract_strided_slice %5 {offsets = [0, 64], sizes = [2, 64], strides = [1, 1]} : vector<2x192xf32> to vector<2x64xf32>
    %20 = vector.extract_strided_slice %10 {offsets = [0, 64], sizes = [2, 64], strides = [1, 1]} : vector<2x192xf32> to vector<2x64xf32>
    %21 = arith.addf %19, %20 : vector<2x64xf32>
    %22 = arith.negf %21 : vector<2x64xf32>
    %23 = math.exp %22 : vector<2x64xf32>
    %cst_10 = arith.constant 1.000000e+00 : f32
    %24 = vector.broadcast %cst_10 : f32 to vector<2x64xf32>
    %25 = arith.addf %24, %23 : vector<2x64xf32>
    %26 = arith.divf %24, %25 : vector<2x64xf32>
    %27 = vector.extract_strided_slice %5 {offsets = [0, 128], sizes = [2, 64], strides = [1, 1]} : vector<2x192xf32> to vector<2x64xf32>
    %28 = vector.extract_strided_slice %10 {offsets = [0, 128], sizes = [2, 64], strides = [1, 1]} : vector<2x192xf32> to vector<2x64xf32>
    %29 = arith.mulf %18, %28 : vector<2x64xf32>
    %30 = arith.addf %27, %29 : vector<2x64xf32>
    %31 = math.tanh %30 : vector<2x64xf32>
    %cst_11 = arith.constant 1.000000e+00 : f32
    %32 = vector.broadcast %cst_11 : f32 to vector<2x64xf32>
    %33 = arith.subf %32, %26 : vector<2x64xf32>
    %34 = arith.mulf %33, %31 : vector<2x64xf32>
    %35 = arith.mulf %26, %3 : vector<2x64xf32>
    %36 = arith.addf %34, %35 : vector<2x64xf32>
    %c0_12 = arith.constant 0 : index
    %c0_13 = arith.constant 0 : index
    %37 = vector.load %arg7[%c0_12, %c0_13] : memref<2x64xf32, #tpu.memory_space<vmem>>, vector<2x64xf32>
    tpu.vector_store %arg7[%c0_12, %c0_13], %36 {strides = array<i32>} : memref<2x64xf32, #tpu.memory_space<vmem>>, vector<2x64xf32>,
    %38 = vector.extract_strided_slice %36 {offsets = [0, 0], sizes = [2, 32], strides = [1, 1]} : vector<2x64xf32> to vector<2x32xf32>
    %c0_14 = arith.constant 0 : index
    %c0_15 = arith.constant 0 : index
    %c0_16 = arith.constant 0 : index
    %39 = vector.load %arg4[%c0_14, %c0_15, %c0_16] : memref<1x2x32xf32, #tpu.memory_space<vmem>>, vector<1x2x32xf32>
    %40 = vector.shape_cast %39 : vector<1x2x32xf32> to vector<2x32xf32>
    %41 = vector.shape_cast %38 : vector<2x32xf32> to vector<1x2x32xf32>
    tpu.vector_store %arg4[%c0_14, %c0_15, %c0_16], %41 {strides = array<i32>} : memref<1x2x32xf32, #tpu.memory_space<vmem>>, vector<1x2x32xf32>,
    %42 = vector.extract_strided_slice %36 {offsets = [0, 32], sizes = [2, 32], strides = [1, 1]} : vector<2x64xf32> to vector<2x32xf32>
    %c0_17 = arith.constant 0 : index
    %c0_18 = arith.constant 0 : index
    %c0_19 = arith.constant 0 : index
    %43 = vector.load %arg5[%c0_17, %c0_18, %c0_19] : memref<1x2x32xf32, #tpu.memory_space<vmem>>, vector<1x2x32xf32>
    %44 = vector.shape_cast %43 : vector<1x2x32xf32> to vector<2x32xf32>
    %45 = vector.shape_cast %42 : vector<2x32xf32> to vector<1x2x32xf32>
    tpu.vector_store %arg5[%c0_17, %c0_18, %c0_19], %45 {strides = array<i32>} : memref<1x2x32xf32, #tpu.memory_space<vmem>>, vector<1x2x32xf32>,
    %c0_20 = arith.constant 0 : index
    %c0_21 = arith.constant 0 : index
    %46 = vector.load %arg6[%c0_20, %c0_21] : memref<2x64xf32, #tpu.memory_space<vmem>>, vector<2x64xf32>
    tpu.vector_store %arg6[%c0_20, %c0_21], %36 {strides = array<i32>} : memref<2x64xf32, #tpu.memory_space<vmem>>, vector<2x64xf32>,
    return
  }
  func.func @transform_0(%arg0: i32) -> (i32, i32, i32) {
    %c0_i32 = arith.constant 0 : i32
    %c0_i32_0 = arith.constant 0 : i32
    %c0_i32_1 = arith.constant 0 : i32
    return %arg0, %c0_i32, %c0_i32_0 : i32, i32, i32
  }
  func.func @transform_1(%arg0: i32) -> (i32, i32) {
    %c0_i32 = arith.constant 0 : i32
    %c0_i32_0 = arith.constant 0 : i32
    %c0_i32_1 = arith.constant 0 : i32
    return %c0_i32, %c0_i32_0 : i32, i32
  }
  func.func @transform_2(%arg0: i32) -> (i32, i32) {
    %c0_i32 = arith.constant 0 : i32
    %c0_i32_0 = arith.constant 0 : i32
    %c0_i32_1 = arith.constant 0 : i32
    return %c0_i32, %c0_i32_0 : i32, i32
  }
  func.func @transform_3(%arg0: i32) -> (i32, i32, i32) {
    %c0_i32 = arith.constant 0 : i32
    %c0_i32_0 = arith.constant 0 : i32
    %c0_i32_1 = arith.constant 0 : i32
    return %arg0, %c0_i32, %c0_i32_0 : i32, i32, i32
  }
  func.func @transform_4(%arg0: i32) -> (i32, i32, i32) {
    %c7_i32 = arith.constant 7 : i32
    %0 = arith.subi %c7_i32, %arg0 : i32
    %c0_i32 = arith.constant 0 : i32
    %c0_i32_0 = arith.constant 0 : i32
    %c0_i32_1 = arith.constant 0 : i32
    return %0, %c0_i32, %c0_i32_0 : i32, i32, i32
  }
  func.func @transform_5(%arg0: i32) -> (i32, i32) {
    %c0_i32 = arith.constant 0 : i32
    %c0_i32_0 = arith.constant 0 : i32
    %c0_i32_1 = arith.constant 0 : i32
    return %c0_i32, %c0_i32_0 : i32, i32
  }
}

module attributes {stable_mosaic.version = 11 : i64} {
  func.func @dec_step_kernel(%arg0: i32, %arg1: memref<7xi32, #tpu.memory_space<smem>>, %arg2: memref<8x2x128xf32, #tpu.memory_space<vmem>>, %arg3: memref<2x32xf32, #tpu.memory_space<vmem>>, %arg4: memref<2x8x64xf32, #tpu.memory_space<vmem>>, %arg5: memref<2x8x32xf32, #tpu.memory_space<vmem>>, %arg6: memref<32x32xf32, #tpu.memory_space<vmem>>, %arg7: memref<1x32xf32, #tpu.memory_space<vmem>>, %arg8: memref<128x16xf32, #tpu.memory_space<vmem>>, %arg9: memref<16x96xf32, #tpu.memory_space<vmem>>, %arg10: memref<64x96xf32, #tpu.memory_space<vmem>>, %arg11: memref<32x96xf32, #tpu.memory_space<vmem>>, %arg12: memref<1x96xf32, #tpu.memory_space<vmem>>, %arg13: memref<1x96xf32, #tpu.memory_space<vmem>>, %arg14: memref<32x128xf32, #tpu.memory_space<vmem>>, %arg15: memref<64x128xf32, #tpu.memory_space<vmem>>, %arg16: memref<16x128xf32, #tpu.memory_space<vmem>>, %arg17: memref<1x128xf32, #tpu.memory_space<vmem>>, %arg18: memref<1x2x128xf32, #tpu.memory_space<vmem>>, %arg19: memref<2x32xf32, #tpu.memory_space<vmem>>, %arg20: memref<2x128xf32, #tpu.memory_space<vmem>>) attributes {dimension_semantics = [#tpu.dimension_semantics<arbitrary>], iteration_bounds = array<i64: 7>, scalar_prefetch = 1 : i64, scratch_operands = 2 : i64, tpu.core_type = #tpu.core_type<tc>, window_params = [{pipeline_mode = #tpu.pipeline_mode<synchronous>, transform_indices = @transform_0, window_bounds = array<i64: 8, 2, 128>}, {pipeline_mode = #tpu.pipeline_mode<synchronous>, transform_indices = @transform_1, window_bounds = array<i64: 2, 32>}, {pipeline_mode = #tpu.pipeline_mode<synchronous>, transform_indices = @transform_2, window_bounds = array<i64: 2, 8, 64>}, {pipeline_mode = #tpu.pipeline_mode<synchronous>, transform_indices = @transform_3, window_bounds = array<i64: 2, 8, 32>}, {pipeline_mode = #tpu.pipeline_mode<synchronous>, transform_indices = @transform_4, window_bounds = array<i64: 32, 32>}, {pipeline_mode = #tpu.pipeline_mode<synchronous>, transform_indices = @transform_5, window_bounds = array<i64: 1, 32>}, {pipeline_mode = #tpu.pipeline_mode<synchronous>, transform_indices = @transform_6, window_bounds = array<i64: 128, 16>}, {pipeline_mode = #tpu.pipeline_mode<synchronous>, transform_indices = @transform_7, window_bounds = array<i64: 16, 96>}, {pipeline_mode = #tpu.pipeline_mode<synchronous>, transform_indices = @transform_8, window_bounds = array<i64: 64, 96>}, {pipeline_mode = #tpu.pipeline_mode<synchronous>, transform_indices = @transform_9, window_bounds = array<i64: 32, 96>}, {pipeline_mode = #tpu.pipeline_mode<synchronous>, transform_indices = @transform_10, window_bounds = array<i64: 1, 96>}, {pipeline_mode = #tpu.pipeline_mode<synchronous>, transform_indices = @transform_11, window_bounds = array<i64: 1, 96>}, {pipeline_mode = #tpu.pipeline_mode<synchronous>, transform_indices = @transform_12, window_bounds = array<i64: 32, 128>}, {pipeline_mode = #tpu.pipeline_mode<synchronous>, transform_indices = @transform_13, window_bounds = array<i64: 64, 128>}, {pipeline_mode = #tpu.pipeline_mode<synchronous>, transform_indices = @transform_14, window_bounds = array<i64: 16, 128>}, {pipeline_mode = #tpu.pipeline_mode<synchronous>, transform_indices = @transform_15, window_bounds = array<i64: 1, 128>}, {transform_indices = @transform_16, window_bounds = array<i64: 1, 2, 128>}]} {
    %c0_i32 = arith.constant 0 : i32
    %0 = arith.cmpi eq, %arg0, %c0_i32 : i32
    %1 = arith.extui %0 : i1 to i32
    %c0_i32_0 = arith.constant 0 : i32
    %2 = arith.cmpi ne, %1, %c0_i32_0 : i32
    scf.if %2 {
      %c0_60 = arith.constant 0 : index
      %c0_61 = arith.constant 0 : index
      %115 = vector.load %arg3[%c0_60, %c0_61] : memref<2x32xf32, #tpu.memory_space<vmem>>, vector<2x32xf32>
      %c0_62 = arith.constant 0 : index
      %c0_63 = arith.constant 0 : index
      %116 = vector.load %arg19[%c0_62, %c0_63] : memref<2x32xf32, #tpu.memory_space<vmem>>, vector<2x32xf32>
      tpu.vector_store %arg19[%c0_62, %c0_63], %115 {strides = array<i32>} : memref<2x32xf32, #tpu.memory_space<vmem>>, vector<2x32xf32>,
      %c0_64 = arith.constant 0 : index
      %c0_65 = arith.constant 0 : index
      %c0_66 = arith.constant 0 : index
      %117 = vector.load %arg2[%c0_64, %c0_65, %c0_66] : memref<8x2x128xf32, #tpu.memory_space<vmem>>, vector<1x2x128xf32>
      %118 = vector.shape_cast %117 : vector<1x2x128xf32> to vector<2x128xf32>
      %c0_67 = arith.constant 0 : index
      %c0_68 = arith.constant 0 : index
      %119 = vector.load %arg20[%c0_67, %c0_68] : memref<2x128xf32, #tpu.memory_space<vmem>>, vector<2x128xf32>
      tpu.vector_store %arg20[%c0_67, %c0_68], %118 {strides = array<i32>} : memref<2x128xf32, #tpu.memory_space<vmem>>, vector<2x128xf32>,
    } else {
    }
    %c0 = arith.constant 0 : index
    %c0_1 = arith.constant 0 : index
    %3 = vector.load %arg19[%c0, %c0_1] : memref<2x32xf32, #tpu.memory_space<vmem>>, vector<2x32xf32>
    %c0_2 = arith.constant 0 : index
    %c0_3 = arith.constant 0 : index
    %4 = vector.load %arg20[%c0_2, %c0_3] : memref<2x128xf32, #tpu.memory_space<vmem>>, vector<2x128xf32>
    %c0_4 = arith.constant 0 : index
    %c0_5 = arith.constant 0 : index
    %5 = vector.load %arg8[%c0_4, %c0_5] : memref<128x16xf32, #tpu.memory_space<vmem>>, vector<128x16xf32>
    %cst = arith.constant dense<0.000000e+00> : vector<2x16xf32>
    %6 = tpu.matmul %4, %5, %cst {dimension_numbers = #tpu.dot_dimension_numbers<[1], [0], [0], [1], [0, 0, 1, 1], [], []>} : vector<2x128xf32>, vector<128x16xf32>, vector<2x16xf32> -> vector<2x16xf32>
    %c0_6 = arith.constant 0 : index
    %c0_7 = arith.constant 0 : index
    %7 = vector.load %arg6[%c0_6, %c0_7] : memref<32x32xf32, #tpu.memory_space<vmem>>, vector<32x32xf32>
    %cst_8 = arith.constant dense<0.000000e+00> : vector<2x32xf32>
    %8 = tpu.matmul %3, %7, %cst_8 {dimension_numbers = #tpu.dot_dimension_numbers<[1], [0], [0], [1], [0, 0, 1, 1], [], []>} : vector<2x32xf32>, vector<32x32xf32>, vector<2x32xf32> -> vector<2x32xf32>
    %9 = vector.shape_cast %8 : vector<2x32xf32> to vector<2x1x32xf32>
    %c0_9 = arith.constant 0 : index
    %c0_10 = arith.constant 0 : index
    %c0_11 = arith.constant 0 : index
    %10 = vector.load %arg5[%c0_9, %c0_10, %c0_11] : memref<2x8x32xf32, #tpu.memory_space<vmem>>, vector<2x8x32xf32>
    %11 = vector.broadcast %9 : vector<2x1x32xf32> to vector<2x8x32xf32>
    %12 = arith.addf %11, %10 : vector<2x8x32xf32>
    %13 = math.tanh %12 : vector<2x8x32xf32>
    %c0_12 = arith.constant 0 : index
    %c0_13 = arith.constant 0 : index
    %14 = vector.load %arg7[%c0_12, %c0_13] : memref<1x32xf32, #tpu.memory_space<vmem>>, vector<1x32xf32>
    %15 = vector.shape_cast %14 : vector<1x32xf32> to vector<1x1x32xf32>
    %16 = vector.broadcast %15 : vector<1x1x32xf32> to vector<2x8x32xf32>
    %17 = arith.mulf %13, %16 : vector<2x8x32xf32>
    %cst_14 = arith.constant dense<0.000000e+00> : vector<2x8xf32>
    %18 = vector.multi_reduction <add>, %17, %cst_14 [2] : vector<2x8x32xf32> to vector<2x8xf32>
    %cst_15 = arith.constant dense<0xFF800000> : vector<2xf32>
    %19 = vector.multi_reduction <maximumf>, %18, %cst_15 [1] : vector<2x8xf32> to vector<2xf32>
    %20 = vector.shape_cast %19 : vector<2xf32> to vector<2x1xf32>
    %21 = vector.broadcast %20 : vector<2x1xf32> to vector<2x8xf32>
    %22 = arith.subf %18, %21 : vector<2x8xf32>
    %23 = math.exp %22 : vector<2x8xf32>
    %cst_16 = arith.constant dense<0.000000e+00> : vector<2xf32>
    %24 = vector.multi_reduction <add>, %23, %cst_16 [1] : vector<2x8xf32> to vector<2xf32>
    %25 = vector.shape_cast %24 : vector<2xf32> to vector<2x1xf32>
    %26 = tpu.reciprocal %25 {approx = true} : vector<2x1xf32> -> vector<2x1xf32>
    %27 = vector.broadcast %26 : vector<2x1xf32> to vector<2x8xf32>
    %28 = arith.mulf %23, %27 : vector<2x8xf32>
    %29 = vector.shape_cast %28 : vector<2x8xf32> to vector<2x8x1xf32>
    %c0_17 = arith.constant 0 : index
    %c0_18 = arith.constant 0 : index
    %c0_19 = arith.constant 0 : index
    %30 = vector.load %arg4[%c0_17, %c0_18, %c0_19] : memref<2x8x64xf32, #tpu.memory_space<vmem>>, vector<2x8x64xf32>
    %31 = vector.broadcast %29 : vector<2x8x1xf32> to vector<2x8x64xf32>
    %32 = arith.mulf %31, %30 : vector<2x8x64xf32>
    %cst_20 = arith.constant dense<0.000000e+00> : vector<2x64xf32>
    %33 = vector.multi_reduction <add>, %32, %cst_20 [1] : vector<2x8x64xf32> to vector<2x64xf32>
    %c0_21 = arith.constant 0 : index
    %c0_22 = arith.constant 0 : index
    %34 = vector.load %arg9[%c0_21, %c0_22] : memref<16x96xf32, #tpu.memory_space<vmem>>, vector<16x96xf32>
    %cst_23 = arith.constant dense<0.000000e+00> : vector<2x96xf32>
    %35 = tpu.matmul %6, %34, %cst_23 {dimension_numbers = #tpu.dot_dimension_numbers<[1], [0], [0], [1], [0, 0, 1, 1], [], []>} : vector<2x16xf32>, vector<16x96xf32>, vector<2x96xf32> -> vector<2x96xf32>
    %c0_24 = arith.constant 0 : index
    %c0_25 = arith.constant 0 : index
    %36 = vector.load %arg10[%c0_24, %c0_25] : memref<64x96xf32, #tpu.memory_space<vmem>>, vector<64x96xf32>
    %cst_26 = arith.constant dense<0.000000e+00> : vector<2x96xf32>
    %37 = tpu.matmul %33, %36, %cst_26 {dimension_numbers = #tpu.dot_dimension_numbers<[1], [0], [0], [1], [0, 0, 1, 1], [], []>} : vector<2x64xf32>, vector<64x96xf32>, vector<2x96xf32> -> vector<2x96xf32>
    %38 = arith.addf %35, %37 : vector<2x96xf32>
    %c0_27 = arith.constant 0 : index
    %c0_28 = arith.constant 0 : index
    %39 = vector.load %arg12[%c0_27, %c0_28] : memref<1x96xf32, #tpu.memory_space<vmem>>, vector<1x96xf32>
    %40 = vector.broadcast %39 : vector<1x96xf32> to vector<2x96xf32>
    %41 = arith.addf %38, %40 : vector<2x96xf32>
    %c0_29 = arith.constant 0 : index
    %c0_30 = arith.constant 0 : index
    %42 = vector.load %arg11[%c0_29, %c0_30] : memref<32x96xf32, #tpu.memory_space<vmem>>, vector<32x96xf32>
    %cst_31 = arith.constant dense<0.000000e+00> : vector<2x96xf32>
    %43 = tpu.matmul %3, %42, %cst_31 {dimension_numbers = #tpu.dot_dimension_numbers<[1], [0], [0], [1], [0, 0, 1, 1], [], []>} : vector<2x32xf32>, vector<32x96xf32>, vector<2x96xf32> -> vector<2x96xf32>
    %c0_32 = arith.constant 0 : index
    %c0_33 = arith.constant 0 : index
    %44 = vector.load %arg13[%c0_32, %c0_33] : memref<1x96xf32, #tpu.memory_space<vmem>>, vector<1x96xf32>
    %45 = vector.broadcast %44 : vector<1x96xf32> to vector<2x96xf32>
    %46 = arith.addf %43, %45 : vector<2x96xf32>
    %47 = vector.extract_strided_slice %41 {offsets = [0, 0], sizes = [2, 32], strides = [1, 1]} : vector<2x96xf32> to vector<2x32xf32>
    %48 = vector.extract_strided_slice %46 {offsets = [0, 0], sizes = [2, 32], strides = [1, 1]} : vector<2x96xf32> to vector<2x32xf32>
    %49 = arith.addf %47, %48 : vector<2x32xf32>
    %50 = arith.negf %49 : vector<2x32xf32>
    %51 = math.exp %50 : vector<2x32xf32>
    %cst_34 = arith.constant 1.000000e+00 : f32
    %52 = vector.broadcast %cst_34 : f32 to vector<2x32xf32>
    %53 = arith.addf %52, %51 : vector<2x32xf32>
    %54 = arith.divf %52, %53 : vector<2x32xf32>
    %55 = vector.extract_strided_slice %41 {offsets = [0, 32], sizes = [2, 32], strides = [1, 1]} : vector<2x96xf32> to vector<2x32xf32>
    %56 = vector.extract_strided_slice %46 {offsets = [0, 32], sizes = [2, 32], strides = [1, 1]} : vector<2x96xf32> to vector<2x32xf32>
    %57 = arith.addf %55, %56 : vector<2x32xf32>
    %58 = arith.negf %57 : vector<2x32xf32>
    %59 = math.exp %58 : vector<2x32xf32>
    %cst_35 = arith.constant 1.000000e+00 : f32
    %60 = vector.broadcast %cst_35 : f32 to vector<2x32xf32>
    %61 = arith.addf %60, %59 : vector<2x32xf32>
    %62 = arith.divf %60, %61 : vector<2x32xf32>
    %63 = vector.extract_strided_slice %41 {offsets = [0, 64], sizes = [2, 32], strides = [1, 1]} : vector<2x96xf32> to vector<2x32xf32>
    %64 = vector.extract_strided_slice %46 {offsets = [0, 64], sizes = [2, 32], strides = [1, 1]} : vector<2x96xf32> to vector<2x32xf32>
    %65 = arith.mulf %54, %64 : vector<2x32xf32>
    %66 = arith.addf %63, %65 : vector<2x32xf32>
    %67 = math.tanh %66 : vector<2x32xf32>
    %cst_36 = arith.constant 1.000000e+00 : f32
    %68 = vector.broadcast %cst_36 : f32 to vector<2x32xf32>
    %69 = arith.subf %68, %62 : vector<2x32xf32>
    %70 = arith.mulf %69, %67 : vector<2x32xf32>
    %71 = arith.mulf %62, %3 : vector<2x32xf32>
    %72 = arith.addf %70, %71 : vector<2x32xf32>
    %c0_37 = arith.constant 0 : index
    %c0_38 = arith.constant 0 : index
    %73 = vector.load %arg19[%c0_37, %c0_38] : memref<2x32xf32, #tpu.memory_space<vmem>>, vector<2x32xf32>
    tpu.vector_store %arg19[%c0_37, %c0_38], %72 {strides = array<i32>} : memref<2x32xf32, #tpu.memory_space<vmem>>, vector<2x32xf32>,
    %c0_39 = arith.constant 0 : index
    %c0_40 = arith.constant 0 : index
    %74 = vector.load %arg14[%c0_39, %c0_40] : memref<32x128xf32, #tpu.memory_space<vmem>>, vector<32x128xf32>
    %cst_41 = arith.constant dense<0.000000e+00> : vector<2x128xf32>
    %75 = tpu.matmul %72, %74, %cst_41 {dimension_numbers = #tpu.dot_dimension_numbers<[1], [0], [0], [1], [0, 0, 1, 1], [], []>} : vector<2x32xf32>, vector<32x128xf32>, vector<2x128xf32> -> vector<2x128xf32>
    %c0_42 = arith.constant 0 : index
    %c0_43 = arith.constant 0 : index
    %76 = vector.load %arg15[%c0_42, %c0_43] : memref<64x128xf32, #tpu.memory_space<vmem>>, vector<64x128xf32>
    %cst_44 = arith.constant dense<0.000000e+00> : vector<2x128xf32>
    %77 = tpu.matmul %33, %76, %cst_44 {dimension_numbers = #tpu.dot_dimension_numbers<[1], [0], [0], [1], [0, 0, 1, 1], [], []>} : vector<2x64xf32>, vector<64x128xf32>, vector<2x128xf32> -> vector<2x128xf32>
    %78 = arith.addf %75, %77 : vector<2x128xf32>
    %c0_45 = arith.constant 0 : index
    %c0_46 = arith.constant 0 : index
    %79 = vector.load %arg16[%c0_45, %c0_46] : memref<16x128xf32, #tpu.memory_space<vmem>>, vector<16x128xf32>
    %cst_47 = arith.constant dense<0.000000e+00> : vector<2x128xf32>
    %80 = tpu.matmul %6, %79, %cst_47 {dimension_numbers = #tpu.dot_dimension_numbers<[1], [0], [0], [1], [0, 0, 1, 1], [], []>} : vector<2x16xf32>, vector<16x128xf32>, vector<2x128xf32> -> vector<2x128xf32>
    %81 = arith.addf %78, %80 : vector<2x128xf32>
    %c0_48 = arith.constant 0 : index
    %c0_49 = arith.constant 0 : index
    %82 = vector.load %arg17[%c0_48, %c0_49] : memref<1x128xf32, #tpu.memory_space<vmem>>, vector<1x128xf32>
    %83 = vector.broadcast %82 : vector<1x128xf32> to vector<2x128xf32>
    %84 = arith.addf %81, %83 : vector<2x128xf32>
    %c0_50 = arith.constant 0 : index
    %c0_51 = arith.constant 0 : index
    %c0_52 = arith.constant 0 : index
    %85 = vector.load %arg18[%c0_50, %c0_51, %c0_52] : memref<1x2x128xf32, #tpu.memory_space<vmem>>, vector<1x2x128xf32>
    %86 = vector.shape_cast %85 : vector<1x2x128xf32> to vector<2x128xf32>
    %87 = vector.shape_cast %84 : vector<2x128xf32> to vector<1x2x128xf32>
    tpu.vector_store %arg18[%c0_50, %c0_51, %c0_52], %87 {strides = array<i32>} : memref<1x2x128xf32, #tpu.memory_space<vmem>>, vector<1x2x128xf32>,
    %cst_53 = arith.constant dense<0xFF800000> : vector<2xf32>
    %88 = vector.multi_reduction <maximumf>, %84, %cst_53 [1] : vector<2x128xf32> to vector<2xf32>
    %89 = vector.shape_cast %88 : vector<2xf32> to vector<2x1xf32>
    %90 = tpu.iota {dimensions = array<i32: 1>} : vector<2x128xi32>
    %91 = vector.broadcast %89 : vector<2x1xf32> to vector<2x128xf32>
    %92 = arith.cmpf oge, %84, %91 : vector<2x128xf32>
    %c128_i32 = arith.constant 128 : i32
    %93 = vector.broadcast %c128_i32 : i32 to vector<2x128xi32>
    %94 = arith.select %92, %90, %93 : vector<2x128xi1>, vector<2x128xi32>
    %cst_54 = arith.constant dense<2147483647> : vector<2xi32>
    %95 = vector.multi_reduction <minsi>, %94, %cst_54 [1] : vector<2x128xi32> to vector<2xi32>
    %96 = vector.shape_cast %95 : vector<2xi32> to vector<2x1xi32>
    %97 = vector.broadcast %96 : vector<2x1xi32> to vector<2x128xi32>
    %98 = arith.cmpi eq, %90, %97 : vector<2x128xi32>
    %99 = arith.extui %98 : vector<2x128xi1> to vector<2x128xi32>
    %100 = arith.sitofp %99 : vector<2x128xi32> to vector<2x128xf32>
    %101 = arith.index_cast %arg0 : i32 to index
    %102 = memref.load %arg1[%101] : memref<7xi32, #tpu.memory_space<smem>>
    %103 = arith.sitofp %102 : i32 to f32
    %c1_i32 = arith.constant 1 : i32
    %104 = arith.addi %arg0, %c1_i32 : i32
    %105 = arith.index_cast %104 : i32 to index
    %c0_55 = arith.constant 0 : index
    %c0_56 = arith.constant 0 : index
    %106 = vector.load %arg2[%105, %c0_55, %c0_56] : memref<8x2x128xf32, #tpu.memory_space<vmem>>, vector<1x2x128xf32>
    %107 = vector.shape_cast %106 : vector<1x2x128xf32> to vector<2x128xf32>
    %108 = vector.broadcast %103 : f32 to vector<2x128xf32>
    %109 = arith.mulf %108, %107 : vector<2x128xf32>
    %cst_57 = arith.constant 1.000000e+00 : f32
    %110 = arith.subf %cst_57, %103 : f32
    %111 = vector.broadcast %110 : f32 to vector<2x128xf32>
    %112 = arith.mulf %111, %100 : vector<2x128xf32>
    %113 = arith.addf %109, %112 : vector<2x128xf32>
    %c0_58 = arith.constant 0 : index
    %c0_59 = arith.constant 0 : index
    %114 = vector.load %arg20[%c0_58, %c0_59] : memref<2x128xf32, #tpu.memory_space<vmem>>, vector<2x128xf32>
    tpu.vector_store %arg20[%c0_58, %c0_59], %113 {strides = array<i32>} : memref<2x128xf32, #tpu.memory_space<vmem>>, vector<2x128xf32>,
    return
  }
  func.func @transform_0(%arg0: i32, %arg1: memref<7xi32, #tpu.memory_space<smem>>) -> (i32, i32, i32) {
    %c0_i32 = arith.constant 0 : i32
    %c0_i32_0 = arith.constant 0 : i32
    %c0_i32_1 = arith.constant 0 : i32
    %c0_i32_2 = arith.constant 0 : i32
    return %c0_i32, %c0_i32_0, %c0_i32_1 : i32, i32, i32
  }
  func.func @transform_1(%arg0: i32, %arg1: memref<7xi32, #tpu.memory_space<smem>>) -> (i32, i32) {
    %c0_i32 = arith.constant 0 : i32
    %c0_i32_0 = arith.constant 0 : i32
    %c0_i32_1 = arith.constant 0 : i32
    return %c0_i32, %c0_i32_0 : i32, i32
  }
  func.func @transform_2(%arg0: i32, %arg1: memref<7xi32, #tpu.memory_space<smem>>) -> (i32, i32, i32) {
    %c0_i32 = arith.constant 0 : i32
    %c0_i32_0 = arith.constant 0 : i32
    %c0_i32_1 = arith.constant 0 : i32
    %c0_i32_2 = arith.constant 0 : i32
    return %c0_i32, %c0_i32_0, %c0_i32_1 : i32, i32, i32
  }
  func.func @transform_3(%arg0: i32, %arg1: memref<7xi32, #tpu.memory_space<smem>>) -> (i32, i32, i32) {
    %c0_i32 = arith.constant 0 : i32
    %c0_i32_0 = arith.constant 0 : i32
    %c0_i32_1 = arith.constant 0 : i32
    %c0_i32_2 = arith.constant 0 : i32
    return %c0_i32, %c0_i32_0, %c0_i32_1 : i32, i32, i32
  }
  func.func @transform_4(%arg0: i32, %arg1: memref<7xi32, #tpu.memory_space<smem>>) -> (i32, i32) {
    %c0_i32 = arith.constant 0 : i32
    %c0_i32_0 = arith.constant 0 : i32
    %c0_i32_1 = arith.constant 0 : i32
    return %c0_i32, %c0_i32_0 : i32, i32
  }
  func.func @transform_5(%arg0: i32, %arg1: memref<7xi32, #tpu.memory_space<smem>>) -> (i32, i32) {
    %c0_i32 = arith.constant 0 : i32
    %c0_i32_0 = arith.constant 0 : i32
    %c0_i32_1 = arith.constant 0 : i32
    return %c0_i32, %c0_i32_0 : i32, i32
  }
  func.func @transform_6(%arg0: i32, %arg1: memref<7xi32, #tpu.memory_space<smem>>) -> (i32, i32) {
    %c0_i32 = arith.constant 0 : i32
    %c0_i32_0 = arith.constant 0 : i32
    %c0_i32_1 = arith.constant 0 : i32
    return %c0_i32, %c0_i32_0 : i32, i32
  }
  func.func @transform_7(%arg0: i32, %arg1: memref<7xi32, #tpu.memory_space<smem>>) -> (i32, i32) {
    %c0_i32 = arith.constant 0 : i32
    %c0_i32_0 = arith.constant 0 : i32
    %c0_i32_1 = arith.constant 0 : i32
    return %c0_i32, %c0_i32_0 : i32, i32
  }
  func.func @transform_8(%arg0: i32, %arg1: memref<7xi32, #tpu.memory_space<smem>>) -> (i32, i32) {
    %c0_i32 = arith.constant 0 : i32
    %c0_i32_0 = arith.constant 0 : i32
    %c0_i32_1 = arith.constant 0 : i32
    return %c0_i32, %c0_i32_0 : i32, i32
  }
  func.func @transform_9(%arg0: i32, %arg1: memref<7xi32, #tpu.memory_space<smem>>) -> (i32, i32) {
    %c0_i32 = arith.constant 0 : i32
    %c0_i32_0 = arith.constant 0 : i32
    %c0_i32_1 = arith.constant 0 : i32
    return %c0_i32, %c0_i32_0 : i32, i32
  }
  func.func @transform_10(%arg0: i32, %arg1: memref<7xi32, #tpu.memory_space<smem>>) -> (i32, i32) {
    %c0_i32 = arith.constant 0 : i32
    %c0_i32_0 = arith.constant 0 : i32
    %c0_i32_1 = arith.constant 0 : i32
    return %c0_i32, %c0_i32_0 : i32, i32
  }
  func.func @transform_11(%arg0: i32, %arg1: memref<7xi32, #tpu.memory_space<smem>>) -> (i32, i32) {
    %c0_i32 = arith.constant 0 : i32
    %c0_i32_0 = arith.constant 0 : i32
    %c0_i32_1 = arith.constant 0 : i32
    return %c0_i32, %c0_i32_0 : i32, i32
  }
  func.func @transform_12(%arg0: i32, %arg1: memref<7xi32, #tpu.memory_space<smem>>) -> (i32, i32) {
    %c0_i32 = arith.constant 0 : i32
    %c0_i32_0 = arith.constant 0 : i32
    %c0_i32_1 = arith.constant 0 : i32
    return %c0_i32, %c0_i32_0 : i32, i32
  }
  func.func @transform_13(%arg0: i32, %arg1: memref<7xi32, #tpu.memory_space<smem>>) -> (i32, i32) {
    %c0_i32 = arith.constant 0 : i32
    %c0_i32_0 = arith.constant 0 : i32
    %c0_i32_1 = arith.constant 0 : i32
    return %c0_i32, %c0_i32_0 : i32, i32
  }
  func.func @transform_14(%arg0: i32, %arg1: memref<7xi32, #tpu.memory_space<smem>>) -> (i32, i32) {
    %c0_i32 = arith.constant 0 : i32
    %c0_i32_0 = arith.constant 0 : i32
    %c0_i32_1 = arith.constant 0 : i32
    return %c0_i32, %c0_i32_0 : i32, i32
  }
  func.func @transform_15(%arg0: i32, %arg1: memref<7xi32, #tpu.memory_space<smem>>) -> (i32, i32) {
    %c0_i32 = arith.constant 0 : i32
    %c0_i32_0 = arith.constant 0 : i32
    %c0_i32_1 = arith.constant 0 : i32
    return %c0_i32, %c0_i32_0 : i32, i32
  }
  func.func @transform_16(%arg0: i32, %arg1: memref<7xi32, #tpu.memory_space<smem>>) -> (i32, i32, i32) {
    %c0_i32 = arith.constant 0 : i32
    %c0_i32_0 = arith.constant 0 : i32
    %c0_i32_1 = arith.constant 0 : i32
    return %arg0, %c0_i32, %c0_i32_0 : i32, i32, i32
  }
}

</mosaic_0001>

<llo_original>
// kernel: seq2seq_forward.2
$region0: #{seq2seq_forward.2}
  #allocation0 [shape = 'u32[]', space=smem, size = 0x4, offset = 0x4, fixed_abs, tag = 'smem constant byte address 0x4 - core index']
  #allocation1 [shape = 'u32[144,128]{1,0:T(1,128)}', space=vmem, size = 0x12000, scoped, tag = 'internal scratch']
  #allocation2 [shape = 'f32[2,64]{1,0:T(2,128)}', space=vmem, size = 0x400, scoped, tag = 'scratch operand']
  %s0 = inlined_call_operand.vmem [shape: f32[8,2,192], index: 0, kind: input, shape index: {}]
  %s1 = inlined_call_operand.vmem [shape: f32[64,192], index: 1, kind: input, shape index: {}]
  %s2 = inlined_call_operand.vmem [shape: f32[1,192], index: 2, kind: input, shape index: {}]
  %s3 = inlined_call_operand.vmem [shape: f32[8,2,32], index: 3, kind: output, shape index: {0}]
  %s4 = inlined_call_operand.vmem [shape: f32[8,2,32], index: 4, kind: output, shape index: {1}]
  %s5 = inlined_call_operand.vmem [shape: f32[2,64], index: 5, kind: output, shape index: {2}]
  %6 = xla_tuple %s3, %s4, %s5
  %s7 = sld [smem:[#allocation0]]
  $region65: #{seq2seq_forward.2} parent=0
    _
  %s9 = ssub.s32 1, %s7
  %s10 = scalar_select 0, %s9, %s7
  loop: start=0, step=1, limit=10
  $region2: #{seq2seq_forward.2} parent=0 // loop_pre_header
    _
  $region3: #{seq2seq_forward.2} parent=0 // loop_header
    %s12 = sphi 0, %s16
    %p13 = scmp.ge.s32.totalorder %s12, 10
    %s22 = sphi 0, %s24
    %s25 = sphi 0, %s22
    %s26 = sphi 0, %s25
    %s42 = sphi 0, %s26
    %s46 = sphi 0, %s46
    %s48 = sphi 0, %s46
    %s49 = sphi 0, %s48
    %s63 = sphi 0, %s49
    %s67 = sphi 0, %s67
    %s69 = sphi 0, %s67
    %s70 = sphi 0, %s69
    %s84 = sphi 0, %s70
    %s90 = sphi 0, %s92
    %s93 = sphi 0, %s90
    %s94 = sphi 0, %s93
    %s110 = sphi 0, %s94
    %s118 = sphi 0, %s120
    %s121 = sphi 0, %s118
    %s122 = sphi 0, %s121
    %s138 = sphi 0, %s122
    %s142 = sphi 0, %s142
    %s144 = sphi 0, %s142
    %s145 = sphi 0, %s144
    %s159 = sphi 0, %s145
  $region4: #{seq2seq_forward.2} parent=0 // loop_header_branch
    %15 = sbr.rel (%p13) target = $region8
  $region5: #{seq2seq_forward.2} parent=0 // loop_body
    %s17 = ssub.s32 %s12, 1
    %s18 = ssub.s32 %s12, 2
    %s19 = sadd.s32 %s12, 1
    %s20 = ssub.s32 %s12, %s19
    %p21 = scmp.eq.s32.totalorder %s20, 0
    %s23 = sadd.s32 %s22, 1
    %s24 = scalar_select %p21, %s22, %s23
    %p27 = pneg %p21
    %p28 = scmp.eq.s32.totalorder %s12, 7
    %p29 = por %p27, %p28
    %p30 = scmp.ne.s32.totalorder %s22, %s25
    %p31 = scmp.eq.s32.totalorder %s12, 0
    %p32 = por %p30, %p31
    %p33 = scmp.ne.s32.totalorder %s22, %s25
    %p34 = scmp.eq.s32.totalorder %s17, 7
    %p35 = por %p33, %p34
    %p36 = scmp.ne.s32.totalorder %s25, %s26
    %p37 = scmp.eq.s32.totalorder %s17, 0
    %p38 = por %p36, %p37
    %p39 = scmp.ne.s32.totalorder %s25, %s26
    %p40 = scmp.eq.s32.totalorder %s18, 7
    %p41 = por %p39, %p40
    %p43 = scmp.ne.s32.totalorder %s26, %s42
    %p44 = scmp.eq.s32.totalorder %s18, 0
    %p45 = por %p43, %p44
    %s47 = sadd.s32 %s46, 1
    %p50 = scmp.eq.s32.totalorder %s12, 7
    %p51 = scmp.ne.s32.totalorder %s46, %s48
    %p52 = scmp.eq.s32.totalorder %s12, 0
    %p53 = por %p51, %p52
    %p54 = scmp.ne.s32.totalorder %s46, %s48
    %p55 = scmp.eq.s32.totalorder %s17, 7
    %p56 = por %p54, %p55
    %p57 = scmp.ne.s32.totalorder %s48, %s49
    %p58 = scmp.eq.s32.totalorder %s17, 0
    %p59 = por %p57, %p58
    %p60 = scmp.ne.s32.totalorder %s48, %s49
    %p61 = scmp.eq.s32.totalorder %s18, 7
    %p62 = por %p60, %p61
    %p64 = scmp.ne.s32.totalorder %s49, %s63
    %p65 = scmp.eq.s32.totalorder %s18, 0
    %p66 = por %p64, %p65
    %s68 = sadd.s32 %s67, 1
    %p71 = scmp.eq.s32.totalorder %s12, 7
    %p72 = scmp.ne.s32.totalorder %s67, %s69
    %p73 = scmp.eq.s32.totalorder %s12, 0
    %p74 = por %p72, %p73
    %p75 = scmp.ne.s32.totalorder %s67, %s69
    %p76 = scmp.eq.s32.totalorder %s17, 7
    %p77 = por %p75, %p76
    %p78 = scmp.ne.s32.totalorder %s69, %s70
    %p79 = scmp.eq.s32.totalorder %s17, 0
    %p80 = por %p78, %p79
    %p81 = scmp.ne.s32.totalorder %s69, %s70
    %p82 = scmp.eq.s32.totalorder %s18, 7
    %p83 = por %p81, %p82
    %p85 = scmp.ne.s32.totalorder %s70, %s84
    %p86 = scmp.eq.s32.totalorder %s18, 0
    %p87 = por %p85, %p86
    %s88 = ssub.s32 %s12, %s19
    %p89 = scmp.eq.s32.totalorder %s88, 0
    %s91 = sadd.s32 %s90, 1
    %s92 = scalar_select %p89, %s90, %s91
    %p95 = pneg %p89
    %p96 = scmp.eq.s32.totalorder %s12, 7
    %p97 = por %p95, %p96
    %p98 = scmp.ne.s32.totalorder %s90, %s93
    %p99 = scmp.eq.s32.totalorder %s12, 0
    %p100 = por %p98, %p99
    %p101 = scmp.ne.s32.totalorder %s90, %s93
    %p102 = scmp.eq.s32.totalorder %s17, 7
    %p103 = por %p101, %p102
    %p104 = scmp.ne.s32.totalorder %s93, %s94
    %p105 = scmp.eq.s32.totalorder %s17, 0
    %p106 = por %p104, %p105
    %p107 = scmp.ne.s32.totalorder %s93, %s94
    %p108 = scmp.eq.s32.totalorder %s18, 7
    %p109 = por %p107, %p108
    %p111 = scmp.ne.s32.totalorder %s94, %s110
    %p112 = scmp.eq.s32.totalorder %s18, 0
    %p113 = por %p111, %p112
    %s114 = ssub.s32 7, %s12
    %s115 = ssub.s32 7, %s19
    %s116 = ssub.s32 %s114, %s115
    %p117 = scmp.eq.s32.totalorder %s116, 0
    %s119 = sadd.s32 %s118, 1
    %s120 = scalar_select %p117, %s118, %s119
    %p123 = pneg %p117
    %p124 = scmp.eq.s32.totalorder %s12, 7
    %p125 = por %p123, %p124
    %p126 = scmp.ne.s32.totalorder %s118, %s121
    %p127 = scmp.eq.s32.totalorder %s12, 0
    %p128 = por %p126, %p127
    %p129 = scmp.ne.s32.totalorder %s118, %s121
    %p130 = scmp.eq.s32.totalorder %s17, 7
    %p131 = por %p129, %p130
    %p132 = scmp.ne.s32.totalorder %s121, %s122
    %p133 = scmp.eq.s32.totalorder %s17, 0
    %p134 = por %p132, %p133
    %p135 = scmp.ne.s32.totalorder %s121, %s122
    %p136 = scmp.eq.s32.totalorder %s18, 7
    %p137 = por %p135, %p136
    %p139 = scmp.ne.s32.totalorder %s122, %s138
    %p140 = scmp.eq.s32.totalorder %s18, 0
    %p141 = por %p139, %p140
    %s143 = sadd.s32 %s142, 1
    %p146 = scmp.eq.s32.totalorder %s12, 7
    %p147 = scmp.ne.s32.totalorder %s142, %s144
    %p148 = scmp.eq.s32.totalorder %s12, 0
    %p149 = por %p147, %p148
    %p150 = scmp.ne.s32.totalorder %s142, %s144
    %p151 = scmp.eq.s32.totalorder %s17, 7
    %p152 = por %p150, %p151
    %p153 = scmp.ne.s32.totalorder %s144, %s145
    %p154 = scmp.eq.s32.totalorder %s17, 0
    %p155 = por %p153, %p154
    %p156 = scmp.ne.s32.totalorder %s144, %s145
    %p157 = scmp.eq.s32.totalorder %s18, 7
    %p158 = por %p156, %p157
    %p160 = scmp.ne.s32.totalorder %s145, %s159
    %p161 = scmp.eq.s32.totalorder %s18, 0
    %p162 = por %p160, %p161
    %p163 = scmp.le.s32.totalorder 1, %s12
    %p164 = scmp.lt.s32.totalorder %s12, 9
    %p165 = pnand %p163, %p164
    %p166 = pneg %p165
    // Predicated region
    $region9: #{seq2seq_forward.2} parent=5 // pred_check
      _
    $region10: #{seq2seq_forward.2} parent=5 // pred_check_branch
      %168 = sbr.rel (%p165) target = $region12
    $region11: #{seq2seq_forward.2} parent=5 // pred_region
      %s169 = ssub.s32 %s12, 1
      // Predicated region
      $region13: #{seq2seq_forward.2} parent=11 // pred_check
        %p170 = pneg %p59
      $region14: #{seq2seq_forward.2} parent=11 // pred_check_branch
        %172 = sbr.rel (%p170) target = $region16
      $region15: #{seq2seq_forward.2} parent=11 // pred_region
        _
      $region16: #{seq2seq_forward.2} parent=11 // pred_fallthru
        _
      // Predicated region
      $region17: #{seq2seq_forward.2} parent=11 // pred_check
        %p173 = pneg %p80
      $region18: #{seq2seq_forward.2} parent=11 // pred_check_branch
        %175 = sbr.rel (%p173) target = $region20
      $region19: #{seq2seq_forward.2} parent=11 // pred_region
        _
      $region20: #{seq2seq_forward.2} parent=11 // pred_fallthru
        _
    $region12: #{seq2seq_forward.2} parent=5 // pred_fallthru
      _
    %p176 = scmp.lt.s32.totalorder %s12, 8
    // Predicated region
    $region21: #{seq2seq_forward.2} parent=5 // pred_check
      %p177 = pneg %p176
    $region22: #{seq2seq_forward.2} parent=5 // pred_check_branch
      %179 = sbr.rel (%p177) target = $region24
    $region23: #{seq2seq_forward.2} parent=5 // pred_region
      // Predicated region
      $region25: #{seq2seq_forward.2} parent=23 // pred_check
        %p180 = pneg %p32
      $region26: #{seq2seq_forward.2} parent=23 // pred_check_branch
        %182 = sbr.rel (%p180) target = $region28
      $region27: #{seq2seq_forward.2} parent=23 // pred_region
        %p183 = scmp.lt.s32.totalorder %s12, 7
        %s184 = scalar_select %p183, %s12, 7
        %s185 = smul.addr %s184, 2
        %s186 = smul.addr %s185, 2
        %s187 = scalar_lea.vmem %s0, %s186
      $region28: #{seq2seq_forward.2} parent=23 // pred_fallthru
        _
    $region24: #{seq2seq_forward.2} parent=5 // pred_fallthru
      _
    %p188 = scmp.le.s32.totalorder 1, %s12
    %p189 = scmp.lt.s32.totalorder %s12, 9
    %p190 = pnand %p188, %p189
    %p191 = pneg %p190
    // Predicated region
    $region29: #{seq2seq_forward.2} parent=5 // pred_check
      _
    $region30: #{seq2seq_forward.2} parent=5 // pred_check_branch
      %193 = sbr.rel (%p190) target = $region32
    $region31: #{seq2seq_forward.2} parent=5 // pred_region
      %s194 = ssub.s32 %s12, 1
      %p195 = scmp.lt.s32.totalorder %s17, 7
      %s196 = scalar_select %p195, %s17, 7
      %s197 = smul.addr %s196, 2
      %s198 = smul.addr %s197, 2
      %s199 = scalar_lea.vmem %s0, %s198
      %p200 = pneg %p38
      %p201 = pneg %p35
      %p202 = pneg %p59
      %p203 = pneg %p56
      %p204 = pneg %p80
      %p205 = pneg %p77
      %p206 = pneg %p106
      %p207 = pneg %p103
      %p208 = scmp.lt.s32.totalorder %s17, 7
      %s209 = scalar_select %p208, %s17, 7
      %s210 = smul.addr %s209, 2
      %s211 = scalar_lea.vmem %s3, %s210
      %p212 = pneg %p134
      %p213 = pneg %p131
      %s214 = ssub.s32 7, %s17
      %p215 = scmp.lt.s32.totalorder %s214, 7
      %s216 = scalar_select %p215, %s214, 7
      %s217 = smul.addr %s216, 2
      %s218 = scalar_lea.vmem %s4, %s217
      %p219 = pneg %p155
      %p220 = pneg %p152
      %p221 = scmp.lt.s32.totalorder %s17, 7
      %s222 = scalar_select %p221, %s17, 7
      %s223 = smul.addr %s222, 2
      %s224 = smul.addr %s223, 2
      %s225 = scalar_lea.vmem %s0, %s224
      %p226 = scmp.lt.s32.totalorder %s17, 7
      %s227 = scalar_select %p226, %s17, 7
      %s228 = smul.addr %s227, 2
      %s229 = scalar_lea.vmem %s3, %s228
      %s230 = ssub.s32 7, %s17
      %p231 = scmp.lt.s32.totalorder %s230, 7
      %s232 = scalar_select %p231, %s230, 7
      %s233 = smul.addr %s232, 2
      %s234 = scalar_lea.vmem %s4, %s233
      %s235 = ssub.s32 7, %s17
      %p236 = scmp.eq.s32.totalorder %s17, 0
      // Predicated region
      $region33: #{seq2seq_forward.2} parent=31 // pred_check
        %p237 = pneg %p236
      $region34: #{seq2seq_forward.2} parent=31 // pred_check_branch
        %239 = sbr.rel (%p237) target = $region36
      $region35: #{seq2seq_forward.2} parent=31 // pred_region
        %vm240 = vcmask 517120
        %241 = vst.msk [vmem:[#allocation2] sm:$0x3] %vm240, 0.0
      $region36: #{seq2seq_forward.2} parent=31 // pred_fallthru
        _
      %v242 = vld [vmem:[#allocation2] sm:$0x3]
      %v243 = vld [vmem:[%s225] sm:$0xf]
      %v244 = vld [vmem:[%s1] sm:$0xff]
      %v245 = vld [vmem:[%s1 + $0x8] sm:$0xff]
      %v246 = vld [vmem:[%s1 + $0x10] sm:$0xff]
      %v247 = vld [vmem:[%s1 + $0x18] sm:$0xff]
      %v248 = vld [vmem:[%s1 + $0x20] sm:$0xff]
      %v249 = vld [vmem:[%s1 + $0x28] sm:$0xff]
      %v250 = vld [vmem:[%s1 + $0x30] sm:$0xff]
      %v251 = vld [vmem:[%s1 + $0x38] sm:$0xff]
      %v252 = vld [vmem:[%s1 + $0x40] sm:$0xff]
      %v253 = vld [vmem:[%s1 + $0x48] sm:$0xff]
      %v254 = vld [vmem:[%s1 + $0x50] sm:$0xff]
      %v255 = vld [vmem:[%s1 + $0x58] sm:$0xff]
      %v256 = vld [vmem:[%s1 + $0x60] sm:$0xff]
      %v257 = vld [vmem:[%s1 + $0x68] sm:$0xff]
      %v258 = vld [vmem:[%s1 + $0x70] sm:$0xff]
      %v259 = vld [vmem:[%s1 + $0x78] sm:$0xff]
      %v260 = vld [vmem:[%s2] sm:$0x3]
      %v262 = vlaneseq
      %v263 = vshrl.u32 %v262, 7
      %v264 = vsub.s32 0, %v263
      %v265 = vrot.slane %v260, %v264
      %v266 = vlaneseq
      %v267 = vshrl.u32 %v266, 7
      %v268 = vsub.s32 1, %v267
      %v269 = vrot.slane %v260, %v268
      %vm272 = vcmask 523264
      %v274 = vsel %vm272, %v242, 0
      %276 = vmatprep.subr.mxu0 %v245
      %277 = vmatpush1.msra.mxu0 %v244
      %278 = vmatprep.subr.mxu0 %v247
      %279 = vmatpush1.msra.mxu0 %v246
      %280 = vmatprep.subr.mxu0 %v249
      %281 = vmatpush1.msra.mxu0 %v248
      %282 = vmatprep.subr.mxu0 %v251
      %283 = vmatpush1.msra.mxu0 %v250
      %284 = vmatprep.subr.mxu0 %v253
      %285 = vmatpush1.msra.mxu0 %v252
      %286 = vmatprep.subr.mxu0 %v255
      %287 = vmatpush1.msra.mxu0 %v254
      %288 = vmatprep.subr.mxu0 %v257
      %289 = vmatpush1.msra.mxu0 %v256
      %290 = vmatprep.subr.mxu0 %v259
      %291 = vmatpush1.msra.mxu0 %v258
      %292 = vmatprep.subr.mxu0 0.0
      %293 = vmatpush1.msra.mxu0 0.0
      %294 = vmatprep.subr.mxu0 0.0
      %295 = vmatpush1.msra.mxu0 0.0
      %296 = vmatprep.subr.mxu0 0.0
      %297 = vmatpush1.msra.mxu0 0.0
      %298 = vmatprep.subr.mxu0 0.0
      %299 = vmatpush1.msra.mxu0 0.0
      %300 = vmatprep.subr.mxu0 0.0
      %301 = vmatpush1.msra.mxu0 0.0
      %302 = vmatprep.subr.mxu0 0.0
      %303 = vmatpush1.msra.mxu0 0.0
      %304 = vmatprep.subr.mxu0 0.0
      %305 = vmatpush1.msra.mxu0 0.0
      %306 = vmatprep.subr.mxu0 0.0
      %307 = vmatpush1.msra.mxu0 0.0
      %308 = vmatprep.subr.mxu0 0.0
      %309 = vmatpush1.msra.mxu0 0.0
      %310 = vmatprep.subr.mxu0 0.0
      %311 = vmatpush1.msra.mxu0 0.0
      %312 = vmatprep.subr.mxu0 0.0
      %313 = vmatpush1.msra.mxu0 0.0
      %314 = vmatprep.subr.mxu0 0.0
      %315 = vmatpush1.msra.mxu0 0.0
      %316 = vmatprep.subr.mxu0 0.0
      %317 = vmatpush1.msra.mxu0 0.0
      %318 = vmatprep.subr.mxu0 0.0
      %319 = vmatpush1.msra.mxu0 0.0
      %320 = vmatprep.subr.mxu0 0.0
      %321 = vmatpush1.msra.mxu0 0.0
      %322 = vmatprep.subr.mxu0 0.0
      %323 = vmatpush1.msra.mxu0 0.0
      %324 = vmatprep.subr.mxu0 0.0
      %325 = vmatpush1.msra.mxu0 0.0
      %326 = vmatprep.subr.mxu0 0.0
      %327 = vmatpush1.msra.mxu0 0.0
      %328 = vmatprep.subr.mxu0 0.0
      %329 = vmatpush1.msra.mxu0 0.0
      %330 = vmatprep.subr.mxu0 0.0
      %331 = vmatpush1.msra.mxu0 0.0
      %332 = vmatprep.subr.mxu0 0.0
      %333 = vmatpush1.msra.mxu0 0.0
      %334 = vmatprep.subr.mxu0 0.0
      %335 = vmatpush1.msra.mxu0 0.0
      %336 = vmatprep.subr.mxu0 0.0
      %337 = vmatpush1.msra.mxu0 0.0
      %338 = vmatprep.subr.mxu0 0.0
      %339 = vmatpush1.msra.mxu0 0.0
      %340 = vmatprep.mubr.f32.mxu0 0.0
      %341 = vmatmul.mubr.f32.gmra.mrb[0].mxu0 %v274
      %v342 = vpop.f32.mrb[0].mxu0
      %v343 = vadd.f32 %v265, %v342
      %v344 = vpop.f32.mrb[0].mxu0
      %v345 = vadd.f32 %v269, %v344
      %346 = vdwg.mxu0
      %v347 = vadd.f32 %v243, %v343
      %v348 = vxor.u32 %v347, 2147483648
      %v349 = vmul.f32 %v348, 1.442695
      %v350 = vpow.pop %v349
      %v351 = vadd.f32 %v350, 1.0
      %v352 = vrcp.pop %v351
      %v353 = vmul.f32 1.0, %v352
      %v354 = vmul.f32 %v353, %v345
      %v356 = vrot.slane %v243, 2
      %v358 = vadd.f32 %v356, %v354
      %v359 = vtanh.pop %v358
      %v360 = vsub.f32 1.0, %v353
      %362 = vrot.lane.b32.xlu0 %v359, 64
      %v363 = vpop.permute.xlu0 %362
      %v365 = vmul.f32 %v360, %v363
      %v367 = vunpack.c.l.s4 1983009808
      %v368 = vunpack.c.0.s8 %v367
      %v369 = vlaneseq
      %v370 = vshrl.u32 %v369, 7
      %v371 = vsub.s32 %v368, %v370
      %v372 = vrot.slane %v242, %v371
      %373 = vrot.lane.b32.xlu0 %v372, 64
      %v374 = vpop.permute.xlu0 %373
      %v376 = vmul.f32 %v353, %v374
      %v377 = vadd.f32 %v365, %v376
      %v380 = vunpack.c.l.s4 1983009808
      %v381 = vunpack.c.0.s8 %v380
      %v382 = vlaneseq
      %v383 = vshrl.u32 %v382, 7
      %v384 = vsub.s32 %v381, %v383
      %v385 = vrot.slane %v377, %v384
      %386 = vrot.lane.b32.xlu0 %v385, 64
      %v387 = vpop.permute.xlu0 %386
      %vm389 = vcmask 517120
      %390 = vst.msk [vmem:[#allocation2] sm:$0x3] %vm389, %v387
      %vm391 = vcmask 254976
      %392 = vst.msk [vmem:[%s229] sm:$0x3] %vm391, %v387
      %393 = vrot.lane.b32.xlu0 %v385, 32
      %v394 = vpop.permute.xlu0 %393
      %396 = vst.msk [vmem:[%s234] sm:$0x3] %vm391, %v394
      %397 = vst.msk [vmem:[%s5] sm:$0x3] %vm389, %v387
      %p398 = scmp.lt.s32.totalorder %s17, 7
      %s399 = scalar_select %p398, %s17, 7
      %s400 = smul.addr %s399, 2
      %s401 = scalar_lea.vmem %s3, %s400
      %s402 = ssub.s32 7, %s17
      %p403 = scmp.lt.s32.totalorder %s402, 7
      %s404 = scalar_select %p403, %s402, 7
      %s405 = smul.addr %s404, 2
      %s406 = scalar_lea.vmem %s4, %s405
      // Predicated region
      $region37: #{seq2seq_forward.2} parent=31 // pred_check
        %p407 = pneg %p103
      $region38: #{seq2seq_forward.2} parent=31 // pred_check_branch
        %409 = sbr.rel (%p407) target = $region40
      $region39: #{seq2seq_forward.2} parent=31 // pred_region
        _
      $region40: #{seq2seq_forward.2} parent=31 // pred_fallthru
        _
      // Predicated region
      $region41: #{seq2seq_forward.2} parent=31 // pred_check
        %p410 = pneg %p131
      $region42: #{seq2seq_forward.2} parent=31 // pred_check_branch
        %412 = sbr.rel (%p410) target = $region44
      $region43: #{seq2seq_forward.2} parent=31 // pred_region
        %s413 = ssub.s32 7, %s17
      $region44: #{seq2seq_forward.2} parent=31 // pred_fallthru
        _
      // Predicated region
      $region45: #{seq2seq_forward.2} parent=31 // pred_check
        %p414 = pneg %p152
      $region46: #{seq2seq_forward.2} parent=31 // pred_check_branch
        %416 = sbr.rel (%p414) target = $region48
      $region47: #{seq2seq_forward.2} parent=31 // pred_region
        _
      $region48: #{seq2seq_forward.2} parent=31 // pred_fallthru
        _
      // Predicated region
      $region49: #{seq2seq_forward.2} parent=31 // pred_check
        %p417 = pneg %p152
      $region50: #{seq2seq_forward.2} parent=31 // pred_check_branch
        %419 = sbr.rel (%p417) target = $region52
      $region51: #{seq2seq_forward.2} parent=31 // pred_region
        _
      $region52: #{seq2seq_forward.2} parent=31 // pred_fallthru
        _
    $region32: #{seq2seq_forward.2} parent=5 // pred_fallthru
      _
    %p420 = scmp.le.s32.totalorder 2, %s12
    // Predicated region
    $region53: #{seq2seq_forward.2} parent=5 // pred_check
      %p421 = pneg %p420
    $region54: #{seq2seq_forward.2} parent=5 // pred_check_branch
      %423 = sbr.rel (%p421) target = $region56
    $region55: #{seq2seq_forward.2} parent=5 // pred_region
      %s424 = ssub.s32 %s12, 2
      // Predicated region
      $region57: #{seq2seq_forward.2} parent=55 // pred_check
        %p425 = pneg %p109
      $region58: #{seq2seq_forward.2} parent=55 // pred_check_branch
        %427 = sbr.rel (%p425) target = $region60
      $region59: #{seq2seq_forward.2} parent=55 // pred_region
        %p428 = scmp.lt.s32.totalorder %s18, 7
        %s429 = scalar_select %p428, %s18, 7
        %s430 = smul.addr %s429, 2
        %s431 = scalar_lea.vmem %s3, %s430
      $region60: #{seq2seq_forward.2} parent=55 // pred_fallthru
        _
      // Predicated region
      $region61: #{seq2seq_forward.2} parent=55 // pred_check
        %p432 = pneg %p137
      $region62: #{seq2seq_forward.2} parent=55 // pred_check_branch
        %434 = sbr.rel (%p432) target = $region64
      $region63: #{seq2seq_forward.2} parent=55 // pred_region
        %s435 = ssub.s32 7, %s18
        %p436 = scmp.lt.s32.totalorder %s435, 7
        %s437 = scalar_select %p436, %s435, 7
        %s438 = smul.addr %s437, 2
        %s439 = scalar_lea.vmem %s4, %s438
      $region64: #{seq2seq_forward.2} parent=55 // pred_fallthru
        _
    $region56: #{seq2seq_forward.2} parent=5 // pred_fallthru
      _
  $region6: #{seq2seq_forward.2} parent=0 // loop_footer
    %s16 = sadd.s32 1, %s12
  $region7: #{seq2seq_forward.2} parent=0 // loop_footer_branch
    %11 = sbr.rel target = $region3
  $region8: #{seq2seq_forward.2} parent=0 // loop_exit
    _

// kernel: seq2seq_forward.3
$region0: #{seq2seq_forward.3}
  #allocation0 [shape = 'u32[]', space=smem, size = 0x4, offset = 0x4, fixed_abs, tag = 'smem constant byte address 0x4 - core index']
  #allocation1 [shape = 'u32[144,128]{1,0:T(1,128)}', space=vmem, size = 0x12000, scoped, tag = 'internal scratch']
  #allocation2 [shape = 'f32[2,32]{1,0:T(2,128)}', space=vmem, size = 0x400, scoped, tag = 'scratch operand']
  #allocation3 [shape = 'f32[2,128]{1,0:T(2,128)}', space=vmem, size = 0x400, scoped, tag = 'scratch operand']
  #allocation4 [shape = 's32[1]{0}', space=sflag, size = 0x4, scoped, tag = 'scoped memory for seq2seq_forward.3']
  #allocation5 [shape = 'u8[512]{0}', space=smem, size = 0x200, scoped, tag = 'prefetched SMEM operand 0']
  %s0 = inlined_call_operand.vmem [shape: s32[7], index: 0, kind: input, shape index: {}]
  %s1 = inlined_call_operand.vmem [shape: f32[8,2,128], index: 1, kind: input, shape index: {}]
  %s2 = inlined_call_operand.vmem [shape: f32[2,32], index: 2, kind: input, shape index: {}]
  %s3 = inlined_call_operand.vmem [shape: f32[2,8,64], index: 3, kind: input, shape index: {}]
  %s4 = inlined_call_operand.vmem [shape: f32[2,8,32], index: 4, kind: input, shape index: {}]
  %s5 = inlined_call_operand.vmem [shape: f32[32,32], index: 5, kind: input, shape index: {}]
  %s6 = inlined_call_operand.vmem [shape: f32[1,32], index: 6, kind: input, shape index: {}]
  %s7 = inlined_call_operand.vmem [shape: f32[128,16], index: 7, kind: input, shape index: {}]
  %s8 = inlined_call_operand.vmem [shape: f32[16,96], index: 8, kind: input, shape index: {}]
  %s9 = inlined_call_operand.vmem [shape: f32[64,96], index: 9, kind: input, shape index: {}]
  %s10 = inlined_call_operand.vmem [shape: f32[32,96], index: 10, kind: input, shape index: {}]
  %s11 = inlined_call_operand.vmem [shape: f32[1,96], index: 11, kind: input, shape index: {}]
  %s12 = inlined_call_operand.vmem [shape: f32[1,96], index: 12, kind: input, shape index: {}]
  %s13 = inlined_call_operand.vmem [shape: f32[32,128], index: 13, kind: input, shape index: {}]
  %s14 = inlined_call_operand.vmem [shape: f32[64,128], index: 14, kind: input, shape index: {}]
  %s15 = inlined_call_operand.vmem [shape: f32[16,128], index: 15, kind: input, shape index: {}]
  %s16 = inlined_call_operand.vmem [shape: f32[1,128], index: 16, kind: input, shape index: {}]
  %s17 = inlined_call_operand.vmem [shape: f32[7,2,128], index: 17, kind: output, shape index: {}]
  %s18 = sld [smem:[#allocation0]]
  $region101: #{seq2seq_forward.3} parent=0
    _
  %s20 = ssub.s32 1, %s18
  %s21 = scalar_select 0, %s20, %s18
  %s22 = sshll.u32 %s0, 4
  %s23 = int_to_ptr.vmem [resolvable:$true] %s22
  %25 = dma.vmem_to_smem %s23, 16, [#allocation5], [#allocation4]
  %26 = dma.done [#allocation4], 16
  %27 = sfence
  loop: start=0, step=1, limit=9
  $region2: #{seq2seq_forward.3} parent=0 // loop_pre_header
    _
  $region3: #{seq2seq_forward.3} parent=0 // loop_header
    %s29 = sphi 0, %s33
    %p30 = scmp.ge.s32.totalorder %s29, 9
    %s37 = sphi 0, %s37
    %s39 = sphi 0, %s37
    %s40 = sphi 0, %s39
    %s54 = sphi 0, %s40
    %s58 = sphi 0, %s58
    %s60 = sphi 0, %s58
    %s61 = sphi 0, %s60
    %s75 = sphi 0, %s61
    %s79 = sphi 0, %s79
    %s81 = sphi 0, %s79
    %s82 = sphi 0, %s81
    %s96 = sphi 0, %s82
    %s100 = sphi 0, %s100
    %s102 = sphi 0, %s100
    %s103 = sphi 0, %s102
    %s117 = sphi 0, %s103
    %s121 = sphi 0, %s121
    %s123 = sphi 0, %s121
    %s124 = sphi 0, %s123
    %s138 = sphi 0, %s124
    %s142 = sphi 0, %s142
    %s144 = sphi 0, %s142
    %s145 = sphi 0, %s144
    %s159 = sphi 0, %s145
    %s163 = sphi 0, %s163
    %s165 = sphi 0, %s163
    %s166 = sphi 0, %s165
    %s180 = sphi 0, %s166
    %s184 = sphi 0, %s184
    %s186 = sphi 0, %s184
    %s187 = sphi 0, %s186
    %s201 = sphi 0, %s187
    %s205 = sphi 0, %s205
    %s207 = sphi 0, %s205
    %s208 = sphi 0, %s207
    %s222 = sphi 0, %s208
    %s226 = sphi 0, %s226
    %s228 = sphi 0, %s226
    %s229 = sphi 0, %s228
    %s243 = sphi 0, %s229
    %s247 = sphi 0, %s247
    %s249 = sphi 0, %s247
    %s250 = sphi 0, %s249
    %s264 = sphi 0, %s250
    %s268 = sphi 0, %s268
    %s270 = sphi 0, %s268
    %s271 = sphi 0, %s270
    %s285 = sphi 0, %s271
    %s289 = sphi 0, %s289
    %s291 = sphi 0, %s289
    %s292 = sphi 0, %s291
    %s306 = sphi 0, %s292
    %s310 = sphi 0, %s310
    %s312 = sphi 0, %s310
    %s313 = sphi 0, %s312
    %s327 = sphi 0, %s313
    %s331 = sphi 0, %s331
    %s333 = sphi 0, %s331
    %s334 = sphi 0, %s333
    %s348 = sphi 0, %s334
    %s352 = sphi 0, %s352
    %s354 = sphi 0, %s352
    %s355 = sphi 0, %s354
    %s369 = sphi 0, %s355
    %s375 = sphi 0, %s377
    %s378 = sphi 0, %s375
    %s379 = sphi 0, %s378
    %s395 = sphi 0, %s379
  $region4: #{seq2seq_forward.3} parent=0 // loop_header_branch
    %32 = sbr.rel (%p30) target = $region8
  $region5: #{seq2seq_forward.3} parent=0 // loop_body
    %s34 = ssub.s32 %s29, 1
    %s35 = ssub.s32 %s29, 2
    %s36 = sadd.s32 %s29, 1
    %s38 = sadd.s32 %s37, 1
    %p41 = scmp.eq.s32.totalorder %s29, 6
    %p42 = scmp.ne.s32.totalorder %s37, %s39
    %p43 = scmp.eq.s32.totalorder %s29, 0
    %p44 = por %p42, %p43
    %p45 = scmp.ne.s32.totalorder %s37, %s39
    %p46 = scmp.eq.s32.totalorder %s34, 6
    %p47 = por %p45, %p46
    %p48 = scmp.ne.s32.totalorder %s39, %s40
    %p49 = scmp.eq.s32.totalorder %s34, 0
    %p50 = por %p48, %p49
    %p51 = scmp.ne.s32.totalorder %s39, %s40
    %p52 = scmp.eq.s32.totalorder %s35, 6
    %p53 = por %p51, %p52
    %p55 = scmp.ne.s32.totalorder %s40, %s54
    %p56 = scmp.eq.s32.totalorder %s35, 0
    %p57 = por %p55, %p56
    %s59 = sadd.s32 %s58, 1
    %p62 = scmp.eq.s32.totalorder %s29, 6
    %p63 = scmp.ne.s32.totalorder %s58, %s60
    %p64 = scmp.eq.s32.totalorder %s29, 0
    %p65 = por %p63, %p64
    %p66 = scmp.ne.s32.totalorder %s58, %s60
    %p67 = scmp.eq.s32.totalorder %s34, 6
    %p68 = por %p66, %p67
    %p69 = scmp.ne.s32.totalorder %s60, %s61
    %p70 = scmp.eq.s32.totalorder %s34, 0
    %p71 = por %p69, %p70
    %p72 = scmp.ne.s32.totalorder %s60, %s61
    %p73 = scmp.eq.s32.totalorder %s35, 6
    %p74 = por %p72, %p73
    %p76 = scmp.ne.s32.totalorder %s61, %s75
    %p77 = scmp.eq.s32.totalorder %s35, 0
    %p78 = por %p76, %p77
    %s80 = sadd.s32 %s79, 1
    %p83 = scmp.eq.s32.totalorder %s29, 6
    %p84 = scmp.ne.s32.totalorder %s79, %s81
    %p85 = scmp.eq.s32.totalorder %s29, 0
    %p86 = por %p84, %p85
    %p87 = scmp.ne.s32.totalorder %s79, %s81
    %p88 = scmp.eq.s32.totalorder %s34, 6
    %p89 = por %p87, %p88
    %p90 = scmp.ne.s32.totalorder %s81, %s82
    %p91 = scmp.eq.s32.totalorder %s34, 0
    %p92 = por %p90, %p91
    %p93 = scmp.ne.s32.totalorder %s81, %s82
    %p94 = scmp.eq.s32.totalorder %s35, 6
    %p95 = por %p93, %p94
    %p97 = scmp.ne.s32.totalorder %s82, %s96
    %p98 = scmp.eq.s32.totalorder %s35, 0
    %p99 = por %p97, %p98
    %s101 = sadd.s32 %s100, 1
    %p104 = scmp.eq.s32.totalorder %s29, 6
    %p105 = scmp.ne.s32.totalorder %s100, %s102
    %p106 = scmp.eq.s32.totalorder %s29, 0
    %p107 = por %p105, %p106
    %p108 = scmp.ne.s32.totalorder %s100, %s102
    %p109 = scmp.eq.s32.totalorder %s34, 6
    %p110 = por %p108, %p109
    %p111 = scmp.ne.s32.totalorder %s102, %s103
    %p112 = scmp.eq.s32.totalorder %s34, 0
    %p113 = por %p111, %p112
    %p114 = scmp.ne.s32.totalorder %s102, %s103
    %p115 = scmp.eq.s32.totalorder %s35, 6
    %p116 = por %p114, %p115
    %p118 = scmp.ne.s32.totalorder %s103, %s117
    %p119 = scmp.eq.s32.totalorder %s35, 0
    %p120 = por %p118, %p119
    %s122 = sadd.s32 %s121, 1
    %p125 = scmp.eq.s32.totalorder %s29, 6
    %p126 = scmp.ne.s32.totalorder %s121, %s123
    %p127 = scmp.eq.s32.totalorder %s29, 0
    %p128 = por %p126, %p127
    %p129 = scmp.ne.s32.totalorder %s121, %s123
    %p130 = scmp.eq.s32.totalorder %s34, 6
    %p131 = por %p129, %p130
    %p132 = scmp.ne.s32.totalorder %s123, %s124
    %p133 = scmp.eq.s32.totalorder %s34, 0
    %p134 = por %p132, %p133
    %p135 = scmp.ne.s32.totalorder %s123, %s124
    %p136 = scmp.eq.s32.totalorder %s35, 6
    %p137 = por %p135, %p136
    %p139 = scmp.ne.s32.totalorder %s124, %s138
    %p140 = scmp.eq.s32.totalorder %s35, 0
    %p141 = por %p139, %p140
    %s143 = sadd.s32 %s142, 1
    %p146 = scmp.eq.s32.totalorder %s29, 6
    %p147 = scmp.ne.s32.totalorder %s142, %s144
    %p148 = scmp.eq.s32.totalorder %s29, 0
    %p149 = por %p147, %p148
    %p150 = scmp.ne.s32.totalorder %s142, %s144
    %p151 = scmp.eq.s32.totalorder %s34, 6
    %p152 = por %p150, %p151
    %p153 = scmp.ne.s32.totalorder %s144, %s145
    %p154 = scmp.eq.s32.totalorder %s34, 0
    %p155 = por %p153, %p154
    %p156 = scmp.ne.s32.totalorder %s144, %s145
    %p157 = scmp.eq.s32.totalorder %s35, 6
    %p158 = por %p156, %p157
    %p160 = scmp.ne.s32.totalorder %s145, %s159
    %p161 = scmp.eq.s32.totalorder %s35, 0
    %p162 = por %p160, %p161
    %s164 = sadd.s32 %s163, 1
    %p167 = scmp.eq.s32.totalorder %s29, 6
    %p168 = scmp.ne.s32.totalorder %s163, %s165
    %p169 = scmp.eq.s32.totalorder %s29, 0
    %p170 = por %p168, %p169
    %p171 = scmp.ne.s32.totalorder %s163, %s165
    %p172 = scmp.eq.s32.totalorder %s34, 6
    %p173 = por %p171, %p172
    %p174 = scmp.ne.s32.totalorder %s165, %s166
    %p175 = scmp.eq.s32.totalorder %s34, 0
    %p176 = por %p174, %p175
    %p177 = scmp.ne.s32.totalorder %s165, %s166
    %p178 = scmp.eq.s32.totalorder %s35, 6
    %p179 = por %p177, %p178
    %p181 = scmp.ne.s32.totalorder %s166, %s180
    %p182 = scmp.eq.s32.totalorder %s35, 0
    %p183 = por %p181, %p182
    %s185 = sadd.s32 %s184, 1
    %p188 = scmp.eq.s32.totalorder %s29, 6
    %p189 = scmp.ne.s32.totalorder %s184, %s186
    %p190 = scmp.eq.s32.totalorder %s29, 0
    %p191 = por %p189, %p190
    %p192 = scmp.ne.s32.totalorder %s184, %s186
    %p193 = scmp.eq.s32.totalorder %s34, 6
    %p194 = por %p192, %p193
    %p195 = scmp.ne.s32.totalorder %s186, %s187
    %p196 = scmp.eq.s32.totalorder %s34, 0
    %p197 = por %p195, %p196
    %p198 = scmp.ne.s32.totalorder %s186, %s187
    %p199 = scmp.eq.s32.totalorder %s35, 6
    %p200 = por %p198, %p199
    %p202 = scmp.ne.s32.totalorder %s187, %s201
    %p203 = scmp.eq.s32.totalorder %s35, 0
    %p204 = por %p202, %p203
    %s206 = sadd.s32 %s205, 1
    %p209 = scmp.eq.s32.totalorder %s29, 6
    %p210 = scmp.ne.s32.totalorder %s205, %s207
    %p211 = scmp.eq.s32.totalorder %s29, 0
    %p212 = por %p210, %p211
    %p213 = scmp.ne.s32.totalorder %s205, %s207
    %p214 = scmp.eq.s32.totalorder %s34, 6
    %p215 = por %p213, %p214
    %p216 = scmp.ne.s32.totalorder %s207, %s208
    %p217 = scmp.eq.s32.totalorder %s34, 0
    %p218 = por %p216, %p217
    %p219 = scmp.ne.s32.totalorder %s207, %s208
    %p220 = scmp.eq.s32.totalorder %s35, 6
    %p221 = por %p219, %p220
    %p223 = scmp.ne.s32.totalorder %s208, %s222
    %p224 = scmp.eq.s32.totalorder %s35, 0
    %p225 = por %p223, %p224
    %s227 = sadd.s32 %s226, 1
    %p230 = scmp.eq.s32.totalorder %s29, 6
    %p231 = scmp.ne.s32.totalorder %s226, %s228
    %p232 = scmp.eq.s32.totalorder %s29, 0
    %p233 = por %p231, %p232
    %p234 = scmp.ne.s32.totalorder %s226, %s228
    %p235 = scmp.eq.s32.totalorder %s34, 6
    %p236 = por %p234, %p235
    %p237 = scmp.ne.s32.totalorder %s228, %s229
    %p238 = scmp.eq.s32.totalorder %s34, 0
    %p239 = por %p237, %p238
    %p240 = scmp.ne.s32.totalorder %s228, %s229
    %p241 = scmp.eq.s32.totalorder %s35, 6
    %p242 = por %p240, %p241
    %p244 = scmp.ne.s32.totalorder %s229, %s243
    %p245 = scmp.eq.s32.totalorder %s35, 0
    %p246 = por %p244, %p245
    %s248 = sadd.s32 %s247, 1
    %p251 = scmp.eq.s32.totalorder %s29, 6
    %p252 = scmp.ne.s32.totalorder %s247, %s249
    %p253 = scmp.eq.s32.totalorder %s29, 0
    %p254 = por %p252, %p253
    %p255 = scmp.ne.s32.totalorder %s247, %s249
    %p256 = scmp.eq.s32.totalorder %s34, 6
    %p257 = por %p255, %p256
    %p258 = scmp.ne.s32.totalorder %s249, %s250
    %p259 = scmp.eq.s32.totalorder %s34, 0
    %p260 = por %p258, %p259
    %p261 = scmp.ne.s32.totalorder %s249, %s250
    %p262 = scmp.eq.s32.totalorder %s35, 6
    %p263 = por %p261, %p262
    %p265 = scmp.ne.s32.totalorder %s250, %s264
    %p266 = scmp.eq.s32.totalorder %s35, 0
    %p267 = por %p265, %p266
    %s269 = sadd.s32 %s268, 1
    %p272 = scmp.eq.s32.totalorder %s29, 6
    %p273 = scmp.ne.s32.totalorder %s268, %s270
    %p274 = scmp.eq.s32.totalorder %s29, 0
    %p275 = por %p273, %p274
    %p276 = scmp.ne.s32.totalorder %s268, %s270
    %p277 = scmp.eq.s32.totalorder %s34, 6
    %p278 = por %p276, %p277
    %p279 = scmp.ne.s32.totalorder %s270, %s271
    %p280 = scmp.eq.s32.totalorder %s34, 0
    %p281 = por %p279, %p280
    %p282 = scmp.ne.s32.totalorder %s270, %s271
    %p283 = scmp.eq.s32.totalorder %s35, 6
    %p284 = por %p282, %p283
    %p286 = scmp.ne.s32.totalorder %s271, %s285
    %p287 = scmp.eq.s32.totalorder %s35, 0
    %p288 = por %p286, %p287
    %s290 = sadd.s32 %s289, 1
    %p293 = scmp.eq.s32.totalorder %s29, 6
    %p294 = scmp.ne.s32.totalorder %s289, %s291
    %p295 = scmp.eq.s32.totalorder %s29, 0
    %p296 = por %p294, %p295
    %p297 = scmp.ne.s32.totalorder %s289, %s291
    %p298 = scmp.eq.s32.totalorder %s34, 6
    %p299 = por %p297, %p298
    %p300 = scmp.ne.s32.totalorder %s291, %s292
    %p301 = scmp.eq.s32.totalorder %s34, 0
    %p302 = por %p300, %p301
    %p303 = scmp.ne.s32.totalorder %s291, %s292
    %p304 = scmp.eq.s32.totalorder %s35, 6
    %p305 = por %p303, %p304
    %p307 = scmp.ne.s32.totalorder %s292, %s306
    %p308 = scmp.eq.s32.totalorder %s35, 0
    %p309 = por %p307, %p308
    %s311 = sadd.s32 %s310, 1
    %p314 = scmp.eq.s32.totalorder %s29, 6
    %p315 = scmp.ne.s32.totalorder %s310, %s312
    %p316 = scmp.eq.s32.totalorder %s29, 0
    %p317 = por %p315, %p316
    %p318 = scmp.ne.s32.totalorder %s310, %s312
    %p319 = scmp.eq.s32.totalorder %s34, 6
    %p320 = por %p318, %p319
    %p321 = scmp.ne.s32.totalorder %s312, %s313
    %p322 = scmp.eq.s32.totalorder %s34, 0
    %p323 = por %p321, %p322
    %p324 = scmp.ne.s32.totalorder %s312, %s313
    %p325 = scmp.eq.s32.totalorder %s35, 6
    %p326 = por %p324, %p325
    %p328 = scmp.ne.s32.totalorder %s313, %s327
    %p329 = scmp.eq.s32.totalorder %s35, 0
    %p330 = por %p328, %p329
    %s332 = sadd.s32 %s331, 1
    %p335 = scmp.eq.s32.totalorder %s29, 6
    %p336 = scmp.ne.s32.totalorder %s331, %s333
    %p337 = scmp.eq.s32.totalorder %s29, 0
    %p338 = por %p336, %p337
    %p339 = scmp.ne.s32.totalorder %s331, %s333
    %p340 = scmp.eq.s32.totalorder %s34, 6
    %p341 = por %p339, %p340
    %p342 = scmp.ne.s32.totalorder %s333, %s334
    %p343 = scmp.eq.s32.totalorder %s34, 0
    %p344 = por %p342, %p343
    %p345 = scmp.ne.s32.totalorder %s333, %s334
    %p346 = scmp.eq.s32.totalorder %s35, 6
    %p347 = por %p345, %p346
    %p349 = scmp.ne.s32.totalorder %s334, %s348
    %p350 = scmp.eq.s32.totalorder %s35, 0
    %p351 = por %p349, %p350
    %s353 = sadd.s32 %s352, 1
    %p356 = scmp.eq.s32.totalorder %s29, 6
    %p357 = scmp.ne.s32.totalorder %s352, %s354
    %p358 = scmp.eq.s32.totalorder %s29, 0
    %p359 = por %p357, %p358
    %p360 = scmp.ne.s32.totalorder %s352, %s354
    %p361 = scmp.eq.s32.totalorder %s34, 6
    %p362 = por %p360, %p361
    %p363 = scmp.ne.s32.totalorder %s354, %s355
    %p364 = scmp.eq.s32.totalorder %s34, 0
    %p365 = por %p363, %p364
    %p366 = scmp.ne.s32.totalorder %s354, %s355
    %p367 = scmp.eq.s32.totalorder %s35, 6
    %p368 = por %p366, %p367
    %p370 = scmp.ne.s32.totalorder %s355, %s369
    %p371 = scmp.eq.s32.totalorder %s35, 0
    %p372 = por %p370, %p371
    %s373 = ssub.s32 %s29, %s36
    %p374 = scmp.eq.s32.totalorder %s373, 0
    %s376 = sadd.s32 %s375, 1
    %s377 = scalar_select %p374, %s375, %s376
    %p380 = pneg %p374
    %p381 = scmp.eq.s32.totalorder %s29, 6
    %p382 = por %p380, %p381
    %p383 = scmp.ne.s32.totalorder %s375, %s378
    %p384 = scmp.eq.s32.totalorder %s29, 0
    %p385 = por %p383, %p384
    %p386 = scmp.ne.s32.totalorder %s375, %s378
    %p387 = scmp.eq.s32.totalorder %s34, 6
    %p388 = por %p386, %p387
    %p389 = scmp.ne.s32.totalorder %s378, %s379
    %p390 = scmp.eq.s32.totalorder %s34, 0
    %p391 = por %p389, %p390
    %p392 = scmp.ne.s32.totalorder %s378, %s379
    %p393 = scmp.eq.s32.totalorder %s35, 6
    %p394 = por %p392, %p393
    %p396 = scmp.ne.s32.totalorder %s379, %s395
    %p397 = scmp.eq.s32.totalorder %s35, 0
    %p398 = por %p396, %p397
    %p399 = scmp.le.s32.totalorder 1, %s29
    %p400 = scmp.lt.s32.totalorder %s29, 8
    %p401 = pnand %p399, %p400
    %p402 = pneg %p401
    // Predicated region
    $region9: #{seq2seq_forward.3} parent=5 // pred_check
      _
    $region10: #{seq2seq_forward.3} parent=5 // pred_check_branch
      %404 = sbr.rel (%p401) target = $region12
    $region11: #{seq2seq_forward.3} parent=5 // pred_region
      %s405 = ssub.s32 %s29, 1
      // Predicated region
      $region13: #{seq2seq_forward.3} parent=11 // pred_check
        %p406 = pneg %p50
      $region14: #{seq2seq_forward.3} parent=11 // pred_check_branch
        %408 = sbr.rel (%p406) target = $region16
      $region15: #{seq2seq_forward.3} parent=11 // pred_region
        _
      $region16: #{seq2seq_forward.3} parent=11 // pred_fallthru
        _
      // Predicated region
      $region17: #{seq2seq_forward.3} parent=11 // pred_check
        %p409 = pneg %p71
      $region18: #{seq2seq_forward.3} parent=11 // pred_check_branch
        %411 = sbr.rel (%p409) target = $region20
      $region19: #{seq2seq_forward.3} parent=11 // pred_region
        _
      $region20: #{seq2seq_forward.3} parent=11 // pred_fallthru
        _
      // Predicated region
      $region21: #{seq2seq_forward.3} parent=11 // pred_check
        %p412 = pneg %p92
      $region22: #{seq2seq_forward.3} parent=11 // pred_check_branch
        %414 = sbr.rel (%p412) target = $region24
      $region23: #{seq2seq_forward.3} parent=11 // pred_region
        _
      $region24: #{seq2seq_forward.3} parent=11 // pred_fallthru
        _
      // Predicated region
      $region25: #{seq2seq_forward.3} parent=11 // pred_check
        %p415 = pneg %p113
      $region26: #{seq2seq_forward.3} parent=11 // pred_check_branch
        %417 = sbr.rel (%p415) target = $region28
      $region27: #{seq2seq_forward.3} parent=11 // pred_region
        _
      $region28: #{seq2seq_forward.3} parent=11 // pred_fallthru
        _
      // Predicated region
      $region29: #{seq2seq_forward.3} parent=11 // pred_check
        %p418 = pneg %p134
      $region30: #{seq2seq_forward.3} parent=11 // pred_check_branch
        %420 = sbr.rel (%p418) target = $region32
      $region31: #{seq2seq_forward.3} parent=11 // pred_region
        _
      $region32: #{seq2seq_forward.3} parent=11 // pred_fallthru
        _
      // Predicated region
      $region33: #{seq2seq_forward.3} parent=11 // pred_check
        %p421 = pneg %p155
      $region34: #{seq2seq_forward.3} parent=11 // pred_check_branch
        %423 = sbr.rel (%p421) target = $region36
      $region35: #{seq2seq_forward.3} parent=11 // pred_region
        _
      $region36: #{seq2seq_forward.3} parent=11 // pred_fallthru
        _
      // Predicated region
      $region37: #{seq2seq_forward.3} parent=11 // pred_check
        %p424 = pneg %p176
      $region38: #{seq2seq_forward.3} parent=11 // pred_check_branch
        %426 = sbr.rel (%p424) target = $region40
      $region39: #{seq2seq_forward.3} parent=11 // pred_region
        _
      $region40: #{seq2seq_forward.3} parent=11 // pred_fallthru
        _
      // Predicated region
      $region41: #{seq2seq_forward.3} parent=11 // pred_check
        %p427 = pneg %p197
      $region42: #{seq2seq_forward.3} parent=11 // pred_check_branch
        %429 = sbr.rel (%p427) target = $region44
      $region43: #{seq2seq_forward.3} parent=11 // pred_region
        _
      $region44: #{seq2seq_forward.3} parent=11 // pred_fallthru
        _
      // Predicated region
      $region45: #{seq2seq_forward.3} parent=11 // pred_check
        %p430 = pneg %p218
      $region46: #{seq2seq_forward.3} parent=11 // pred_check_branch
        %432 = sbr.rel (%p430) target = $region48
      $region47: #{seq2seq_forward.3} parent=11 // pred_region
        _
      $region48: #{seq2seq_forward.3} parent=11 // pred_fallthru
        _
      // Predicated region
      $region49: #{seq2seq_forward.3} parent=11 // pred_check
        %p433 = pneg %p239
      $region50: #{seq2seq_forward.3} parent=11 // pred_check_branch
        %435 = sbr.rel (%p433) target = $region52
      $region51: #{seq2seq_forward.3} parent=11 // pred_region
        _
      $region52: #{seq2seq_forward.3} parent=11 // pred_fallthru
        _
      // Predicated region
      $region53: #{seq2seq_forward.3} parent=11 // pred_check
        %p436 = pneg %p260
      $region54: #{seq2seq_forward.3} parent=11 // pred_check_branch
        %438 = sbr.rel (%p436) target = $region56
      $region55: #{seq2seq_forward.3} parent=11 // pred_region
        _
      $region56: #{seq2seq_forward.3} parent=11 // pred_fallthru
        _
      // Predicated region
      $region57: #{seq2seq_forward.3} parent=11 // pred_check
        %p439 = pneg %p281
      $region58: #{seq2seq_forward.3} parent=11 // pred_check_branch
        %441 = sbr.rel (%p439) target = $region60
      $region59: #{seq2seq_forward.3} parent=11 // pred_region
        _
      $region60: #{seq2seq_forward.3} parent=11 // pred_fallthru
        _
      // Predicated region
      $region61: #{seq2seq_forward.3} parent=11 // pred_check
        %p442 = pneg %p302
      $region62: #{seq2seq_forward.3} parent=11 // pred_check_branch
        %444 = sbr.rel (%p442) target = $region64
      $region63: #{seq2seq_forward.3} parent=11 // pred_region
        _
      $region64: #{seq2seq_forward.3} parent=11 // pred_fallthru
        _
      // Predicated region
      $region65: #{seq2seq_forward.3} parent=11 // pred_check
        %p445 = pneg %p323
      $region66: #{seq2seq_forward.3} parent=11 // pred_check_branch
        %447 = sbr.rel (%p445) target = $region68
      $region67: #{seq2seq_forward.3} parent=11 // pred_region
        _
      $region68: #{seq2seq_forward.3} parent=11 // pred_fallthru
        _
      // Predicated region
      $region69: #{seq2seq_forward.3} parent=11 // pred_check
        %p448 = pneg %p344
      $region70: #{seq2seq_forward.3} parent=11 // pred_check_branch
        %450 = sbr.rel (%p448) target = $region72
      $region71: #{seq2seq_forward.3} parent=11 // pred_region
        _
      $region72: #{seq2seq_forward.3} parent=11 // pred_fallthru
        _
      // Predicated region
      $region73: #{seq2seq_forward.3} parent=11 // pred_check
        %p451 = pneg %p365
      $region74: #{seq2seq_forward.3} parent=11 // pred_check_branch
        %453 = sbr.rel (%p451) target = $region76
      $region75: #{seq2seq_forward.3} parent=11 // pred_region
        _
      $region76: #{seq2seq_forward.3} parent=11 // pred_fallthru
        _
    $region12: #{seq2seq_forward.3} parent=5 // pred_fallthru
      _
    %p454 = scmp.lt.s32.totalorder %s29, 7
    // Predicated region
    $region77: #{seq2seq_forward.3} parent=5 // pred_check
      %p455 = pneg %p454
    $region78: #{seq2seq_forward.3} parent=5 // pred_check_branch
      %457 = sbr.rel (%p455) target = $region80
    $region79: #{seq2seq_forward.3} parent=5 // pred_region
      _
    $region80: #{seq2seq_forward.3} parent=5 // pred_fallthru
      _
    %p458 = scmp.le.s32.totalorder 1, %s29
    %p459 = scmp.lt.s32.totalorder %s29, 8
    %p460 = pnand %p458, %p459
    %p461 = pneg %p460
    // Predicated region
    $region81: #{seq2seq_forward.3} parent=5 // pred_check
      _
    $region82: #{seq2seq_forward.3} parent=5 // pred_check_branch
      %463 = sbr.rel (%p460) target = $region84
    $region83: #{seq2seq_forward.3} parent=5 // pred_region
      %s464 = ssub.s32 %s29, 1
      %p465 = pneg %p50
      %p466 = pneg %p47
      %p467 = pneg %p71
      %p468 = pneg %p68
      %p469 = pneg %p92
      %p470 = pneg %p89
      %p471 = pneg %p113
      %p472 = pneg %p110
      %p473 = pneg %p134
      %p474 = pneg %p131
      %p475 = pneg %p155
      %p476 = pneg %p152
      %p477 = pneg %p176
      %p478 = pneg %p173
      %p479 = pneg %p197
      %p480 = pneg %p194
      %p481 = pneg %p218
      %p482 = pneg %p215
      %p483 = pneg %p239
      %p484 = pneg %p236
      %p485 = pneg %p260
      %p486 = pneg %p257
      %p487 = pneg %p281
      %p488 = pneg %p278
      %p489 = pneg %p302
      %p490 = pneg %p299
      %p491 = pneg %p323
      %p492 = pneg %p320
      %p493 = pneg %p344
      %p494 = pneg %p341
      %p495 = pneg %p365
      %p496 = pneg %p362
      %p497 = pneg %p391
      %p498 = pneg %p388
      %p499 = scmp.lt.s32.totalorder %s34, 6
      %s500 = scalar_select %p499, %s34, 6
      %s501 = smul.addr %s500, 2
      %s502 = scalar_lea.vmem %s17, %s501
      %p503 = scmp.lt.s32.totalorder %s34, 6
      %s504 = scalar_select %p503, %s34, 6
      %s505 = smul.addr %s504, 2
      %s506 = scalar_lea.vmem %s17, %s505
      %p507 = scmp.eq.s32.totalorder %s34, 0
      // Predicated region
      $region85: #{seq2seq_forward.3} parent=83 // pred_check
        %p508 = pneg %p507
      $region86: #{seq2seq_forward.3} parent=83 // pred_check_branch
        %510 = sbr.rel (%p508) target = $region88
      $region87: #{seq2seq_forward.3} parent=83 // pred_region
        %v511 = vld [vmem:[%s2] sm:$0x3]
        %vm512 = vcmask 254976
        %513 = vst.msk [vmem:[#allocation2] sm:$0x3] %vm512, %v511
        %v514 = vld [vmem:[%s1] sm:$0x3]
        %515 = vst [vmem:[#allocation3] sm:$0x3] %v514
      $region88: #{seq2seq_forward.3} parent=83 // pred_fallthru
        _
      %v516 = vld [vmem:[#allocation2] sm:$0x3]
      %v517 = vld [vmem:[#allocation3] sm:$0x3]
      %v518 = vld [vmem:[%s7] sm:$0xff]
      %v519 = vld [vmem:[%s7 + $0x8] sm:$0xff]
      %v520 = vld [vmem:[%s7 + $0x10] sm:$0xff]
      %v521 = vld [vmem:[%s7 + $0x18] sm:$0xff]
      %v522 = vld [vmem:[%s7 + $0x20] sm:$0xff]
      %v523 = vld [vmem:[%s7 + $0x28] sm:$0xff]
      %v524 = vld [vmem:[%s7 + $0x30] sm:$0xff]
      %v525 = vld [vmem:[%s7 + $0x38] sm:$0xff]
      %v526 = vld [vmem:[%s7 + $0x40] sm:$0xff]
      %v527 = vld [vmem:[%s7 + $0x48] sm:$0xff]
      %v528 = vld [vmem:[%s7 + $0x50] sm:$0xff]
      %v529 = vld [vmem:[%s7 + $0x58] sm:$0xff]
      %v530 = vld [vmem:[%s7 + $0x60] sm:$0xff]
      %v531 = vld [vmem:[%s7 + $0x68] sm:$0xff]
      %v532 = vld [vmem:[%s7 + $0x70] sm:$0xff]
      %v533 = vld [vmem:[%s7 + $0x78] sm:$0xff]
      %534 = vmatprep.subr.mxu0 0.0
      %535 = vmatpush1.msra.mxu0 %v518
      %536 = vmatprep.subr.mxu0 0.0
      %537 = vmatpush1.msra.mxu0 %v519
      %538 = vmatprep.subr.mxu0 0.0
      %539 = vmatpush1.msra.mxu0 %v520
      %540 = vmatprep.subr.mxu0 0.0
      %541 = vmatpush1.msra.mxu0 %v521
      %542 = vmatprep.subr.mxu0 0.0
      %543 = vmatpush1.msra.mxu0 %v522
      %544 = vmatprep.subr.mxu0 0.0
      %545 = vmatpush1.msra.mxu0 %v523
      %546 = vmatprep.subr.mxu0 0.0
      %547 = vmatpush1.msra.mxu0 %v524
      %548 = vmatprep.subr.mxu0 0.0
      %549 = vmatpush1.msra.mxu0 %v525
      %550 = vmatprep.subr.mxu0 0.0
      %551 = vmatpush1.msra.mxu0 %v526
      %552 = vmatprep.subr.mxu0 0.0
      %553 = vmatpush1.msra.mxu0 %v527
      %554 = vmatprep.subr.mxu0 0.0
      %555 = vmatpush1.msra.mxu0 %v528
      %556 = vmatprep.subr.mxu0 0.0
      %557 = vmatpush1.msra.mxu0 %v529
      %558 = vmatprep.subr.mxu0 0.0
      %559 = vmatpush1.msra.mxu0 %v530
      %560 = vmatprep.subr.mxu0 0.0
      %561 = vmatpush1.msra.mxu0 %v531
      %562 = vmatprep.subr.mxu0 0.0
      %563 = vmatpush1.msra.mxu0 %v532
      %564 = vmatprep.subr.mxu0 0.0
      %565 = vmatpush1.msra.mxu0 %v533
      %566 = vmatprep.subr.mxu0 0.0
      %567 = vmatpush1.msra.mxu0 0.0
      %568 = vmatprep.subr.mxu0 0.0
      %569 = vmatpush1.msra.mxu0 0.0
      %570 = vmatprep.subr.mxu0 0.0
      %571 = vmatpush1.msra.mxu0 0.0
      %572 = vmatprep.subr.mxu0 0.0
      %573 = vmatpush1.msra.mxu0 0.0
      %574 = vmatprep.subr.mxu0 0.0
      %575 = vmatpush1.msra.mxu0 0.0
      %576 = vmatprep.subr.mxu0 0.0
      %577 = vmatpush1.msra.mxu0 0.0
      %578 = vmatprep.subr.mxu0 0.0
      %579 = vmatpush1.msra.mxu0 0.0
      %580 = vmatprep.subr.mxu0 0.0
      %581 = vmatpush1.msra.mxu0 0.0
      %582 = vmatprep.subr.mxu0 0.0
      %583 = vmatpush1.msra.mxu0 0.0
      %584 = vmatprep.subr.mxu0 0.0
      %585 = vmatpush1.msra.mxu0 0.0
      %586 = vmatprep.subr.mxu0 0.0
      %587 = vmatpush1.msra.mxu0 0.0
      %588 = vmatprep.subr.mxu0 0.0
      %589 = vmatpush1.msra.mxu0 0.0
      %590 = vmatprep.subr.mxu0 0.0
      %591 = vmatpush1.msra.mxu0 0.0
      %592 = vmatprep.subr.mxu0 0.0
      %593 = vmatpush1.msra.mxu0 0.0
      %594 = vmatprep.subr.mxu0 0.0
      %595 = vmatpush1.msra.mxu0 0.0
      %596 = vmatprep.subr.mxu0 0.0
      %597 = vmatpush1.msra.mxu0 0.0
      %598 = vmatprep.mubr.f32.mxu0 0.0
      %599 = vmatmul.mubr.f32.gmra.mrb[0].mxu0 %v517
      %v600 = vpop.f32.mrb[0].mxu0
      %v601 = vadd.f32 0.0, %v600
      %v602 = vpop.f32.mrb[0].mxu0
      %603 = vdwg.mxu0
      %v604 = vld [vmem:[%s5] sm:$0xff]
      %v605 = vld [vmem:[%s5 + $0x8] sm:$0xff]
      %v606 = vld [vmem:[%s5 + $0x10] sm:$0xff]
      %v607 = vld [vmem:[%s5 + $0x18] sm:$0xff]
      %vm608 = vcmask 261120
      %v610 = vsel %vm608, %v516, 0
      %612 = vmatprep.subr.mxu0 0.0
      %613 = vmatpush1.msra.mxu0 %v604
      %614 = vmatprep.subr.mxu0 0.0
      %615 = vmatpush1.msra.mxu0 %v605
      %616 = vmatprep.subr.mxu0 0.0
      %617 = vmatpush1.msra.mxu0 %v606
      %618 = vmatprep.subr.mxu0 0.0
      %619 = vmatpush1.msra.mxu0 %v607
      %620 = vmatprep.subr.mxu0 0.0
      %621 = vmatpush1.msra.mxu0 0.0
      %622 = vmatprep.subr.mxu0 0.0
      %623 = vmatpush1.msra.mxu0 0.0
      %624 = vmatprep.subr.mxu0 0.0
      %625 = vmatpush1.msra.mxu0 0.0
      %626 = vmatprep.subr.mxu0 0.0
      %627 = vmatpush1.msra.mxu0 0.0
      %628 = vmatprep.subr.mxu0 0.0
      %629 = vmatpush1.msra.mxu0 0.0
      %630 = vmatprep.subr.mxu0 0.0
      %631 = vmatpush1.msra.mxu0 0.0
      %632 = vmatprep.subr.mxu0 0.0
      %633 = vmatpush1.msra.mxu0 0.0
      %634 = vmatprep.subr.mxu0 0.0
      %635 = vmatpush1.msra.mxu0 0.0
      %636 = vmatprep.subr.mxu0 0.0
      %637 = vmatpush1.msra.mxu0 0.0
      %638 = vmatprep.subr.mxu0 0.0
      %639 = vmatpush1.msra.mxu0 0.0
      %640 = vmatprep.subr.mxu0 0.0
      %641 = vmatpush1.msra.mxu0 0.0
      %642 = vmatprep.subr.mxu0 0.0
      %643 = vmatpush1.msra.mxu0 0.0
      %644 = vmatprep.subr.mxu0 0.0
      %645 = vmatpush1.msra.mxu0 0.0
      %646 = vmatprep.subr.mxu0 0.0
      %647 = vmatpush1.msra.mxu0 0.0
      %648 = vmatprep.subr.mxu0 0.0
      %649 = vmatpush1.msra.mxu0 0.0
      %650 = vmatprep.subr.mxu0 0.0
      %651 = vmatpush1.msra.mxu0 0.0
      %652 = vmatprep.subr.mxu0 0.0
      %653 = vmatpush1.msra.mxu0 0.0
      %654 = vmatprep.subr.mxu0 0.0
      %655 = vmatpush1.msra.mxu0 0.0
      %656 = vmatprep.subr.mxu0 0.0
      %657 = vmatpush1.msra.mxu0 0.0
      %658 = vmatprep.subr.mxu0 0.0
      %659 = vmatpush1.msra.mxu0 0.0
      %660 = vmatprep.subr.mxu0 0.0
      %661 = vmatpush1.msra.mxu0 0.0
      %662 = vmatprep.subr.mxu0 0.0
      %663 = vmatpush1.msra.mxu0 0.0
      %664 = vmatprep.subr.mxu0 0.0
      %665 = vmatpush1.msra.mxu0 0.0
      %666 = vmatprep.subr.mxu0 0.0
      %667 = vmatpush1.msra.mxu0 0.0
      %668 = vmatprep.subr.mxu0 0.0
      %669 = vmatpush1.msra.mxu0 0.0
      %670 = vmatprep.subr.mxu0 0.0
      %671 = vmatpush1.msra.mxu0 0.0
      %672 = vmatprep.subr.mxu0 0.0
      %673 = vmatpush1.msra.mxu0 0.0
      %674 = vmatprep.subr.mxu0 0.0
      %675 = vmatpush1.msra.mxu0 0.0
      %676 = vmatprep.mubr.f32.mxu0 0.0
      %677 = vmatmul.mubr.f32.gmra.mrb[0].mxu0 %v610
      %v678 = vpop.f32.mrb[0].mxu0
      %v679 = vadd.f32 0.0, %v678
      %v680 = vpop.f32.mrb[0].mxu0
      %681 = vdwg.mxu0
      %v684 = vunpack.c.l.s4 1966171168
      %v685 = vunpack.c.0.s8 %v684
      %v686 = vlaneseq
      %v687 = vshrl.u32 %v686, 7
      %v688 = vsub.s32 %v685, %v687
      %v689 = vrot.slane %v679, %v688
      %v690 = vcombine.high %v689, %v689
      %v692 = vunpack.c.l.s4 1966171168
      %v693 = vunpack.c.0.s8 %v692
      %v694 = vlaneseq
      %v695 = vshrl.u32 %v694, 7
      %v696 = vsub.s32 %v693, %v695
      %v697 = vrot.slane %v689, %v696
      %v699 = vunpack.c.l.s4 1966171168
      %v700 = vunpack.c.0.s8 %v699
      %v701 = vlaneseq
      %v702 = vshrl.u32 %v701, 7
      %v703 = vsub.s32 %v700, %v702
      %v704 = vrot.slane %v690, %v703
      %v705 = vld [vmem:[%s4] sm:$0xff]
      %v706 = vld [vmem:[%s4 + $0x8] sm:$0xff]
      %v707 = vlaneseq
      %v708 = vshrl.u32 %v707, 7
      %v709 = vsub.s32 0, %v708
      %v710 = vrot.slane %v697, %v709
      %v711 = vlaneseq
      %v712 = vshrl.u32 %v711, 7
      %v713 = vsub.s32 0, %v712
      %v714 = vrot.slane %v704, %v713
      %v717 = vadd.f32 %v710, %v705
      %v718 = vadd.f32 %v714, %v706
      %v719 = vtanh.pop %v717
      %v720 = vtanh.pop %v718
      %v721 = vld [vmem:[%s6] sm:$0x1]
      %v723 = vlaneseq
      %v724 = vshrl.u32 %v723, 7
      %v725 = vsub.s32 0, %v724
      %v726 = vrot.slane %v721, %v725
      %v728 = vmul.f32 %v719, %v726
      %v729 = vmul.f32 %v720, %v726
      %v730 = vsel %vm608, %v728, 0.0
      %731 = vadd.xlane.f32.xlu0 %v730
      %v732 = vpop.xlane.xlu0 %731
      %v733 = vsel %vm608, %v729, 0.0
      %734 = vadd.xlane.f32.xlu0 %v733
      %v735 = vpop.xlane.xlu0 %734
      %v738 = vlaneseq
      %v739 = vand.u32 %v738, 127
      %v740 = vlaneseq
      %v741 = vshrl.u32 %v740, 7
      %v742 = vsub.s32 %v739, %v741
      %v743 = vrot.slane %v732, %v742
      %v744 = vlaneseq
      %v745 = vshrl.u32 %v744, 7
      %v746 = vsub.s32 %v739, %v745
      %v747 = vrot.slane %v735, %v746
      %vm748 = vcmask 1041409
      %v749 = vsel %vm748, %v747, %v743
      %vm751 = vcmask 58368
      %v752 = vsel %vm751, %v749, -inf
      %753 = vmax.xlane.f32.xlu0 %v752
      %v754 = vpop.xlane.xlu0 %753
      %v756 = vlaneseq
      %v757 = vshrl.u32 %v756, 7
      %v758 = vsub.s32 0, %v757
      %v759 = vrot.slane %v754, %v758
      %v760 = vlaneseq
      %v761 = vshrl.u32 %v760, 7
      %v762 = vsub.s32 1, %v761
      %v763 = vrot.slane %v754, %v762
      %v766 = vsub.f32 %v732, %v759
      %v767 = vsub.f32 %v735, %v763
      %v768 = vmul.f32 %v766, 1.442695
      %v769 = vpow.pop %v768
      %v770 = vmul.f32 %v767, 1.442695
      %v771 = vpow.pop %v770
      %774 = vset.pattern.permute.xlu0 0
      %775 = vperm.xlu0 %774, %v769
      %v776 = vpop.permute.xlu0 %775
      %777 = vset.pattern.permute.xlu0 0
      %778 = vperm.xlu0 %777, %v771
      %v779 = vpop.permute.xlu0 %778
      %v780 = vlaneseq
      %v781 = vshrl.u32 %v780, 7
      %v782 = vsub.s32 %v739, %v781
      %v783 = vrot.slane %v776, %v782
      %v784 = vlaneseq
      %v785 = vshrl.u32 %v784, 7
      %v786 = vsub.s32 %v739, %v785
      %v787 = vrot.slane %v779, %v786
      %v788 = vsel %vm748, %v787, %v783
      %v790 = vsel %vm751, %v788, 0.0
      %791 = vadd.xlane.f32.xlu0 %v790
      %v792 = vpop.xlane.xlu0 %791
      %v793 = vrcp.pop %v792
      %v795 = vlaneseq
      %v796 = vshrl.u32 %v795, 7
      %v797 = vsub.s32 0, %v796
      %v798 = vrot.slane %v793, %v797
      %v799 = vlaneseq
      %v800 = vshrl.u32 %v799, 7
      %v801 = vsub.s32 1, %v800
      %v802 = vrot.slane %v793, %v801
      %v805 = vmul.f32 %v769, %v798
      %v806 = vmul.f32 %v771, %v802
      %v807 = vld [vmem:[%s3] sm:$0xff]
      %v808 = vld [vmem:[%s3 + $0x8] sm:$0xff]
      %810 = vset.pattern.permute.xlu0 0
      %811 = vperm.xlu0 %810, %v805
      %v812 = vpop.permute.xlu0 %811
      %815 = vset.pattern.permute.xlu0 0
      %816 = vperm.xlu0 %815, %v806
      %v817 = vpop.permute.xlu0 %816
      %v819 = vmul.f32 %v812, %v807
      %v820 = vmul.f32 %v817, %v808
      %vm821 = vcmask 523264
      %v822 = vsel %vm821, %v819, 0.0
      %v823 = vrot.slane %v822, 4
      %v824 = vadd.f32 %v822, %v823
      %v825 = vrot.slane %v824, 2
      %v826 = vadd.f32 %v824, %v825
      %v827 = vrot.slane %v826, 1
      %v828 = vadd.f32 %v826, %v827
      %v829 = vsel %vm821, %v820, 0.0
      %v830 = vrot.slane %v829, 4
      %v831 = vadd.f32 %v829, %v830
      %v832 = vrot.slane %v831, 2
      %v833 = vadd.f32 %v831, %v832
      %v834 = vrot.slane %v833, 1
      %v835 = vadd.f32 %v833, %v834
      %v836 = vld [vmem:[%s8] sm:$0xff]
      %v837 = vld [vmem:[%s8 + $0x8] sm:$0xff]
      %v838 = vld [vmem:[%s9] sm:$0xff]
      %v839 = vld [vmem:[%s9 + $0x8] sm:$0xff]
      %v840 = vld [vmem:[%s9 + $0x10] sm:$0xff]
      %v841 = vld [vmem:[%s9 + $0x18] sm:$0xff]
      %v842 = vld [vmem:[%s9 + $0x20] sm:$0xff]
      %v843 = vld [vmem:[%s9 + $0x28] sm:$0xff]
      %v844 = vld [vmem:[%s9 + $0x30] sm:$0xff]
      %v845 = vld [vmem:[%s9 + $0x38] sm:$0xff]
      %v848 = vsel %vm748, %v835, %v828
      %v849 = vsel %vm821, %v848, 0
      %851 = vmatprep.subr.mxu0 0.0
      %852 = vmatpush1.msra.mxu0 %v838
      %853 = vmatprep.subr.mxu0 0.0
      %854 = vmatpush1.msra.mxu0 %v839
      %855 = vmatprep.subr.mxu0 0.0
      %856 = vmatpush1.msra.mxu0 %v840
      %857 = vmatprep.subr.mxu0 0.0
      %858 = vmatpush1.msra.mxu0 %v841
      %859 = vmatprep.subr.mxu0 0.0
      %860 = vmatpush1.msra.mxu0 %v842
      %861 = vmatprep.subr.mxu0 0.0
      %862 = vmatpush1.msra.mxu0 %v843
      %863 = vmatprep.subr.mxu0 0.0
      %864 = vmatpush1.msra.mxu0 %v844
      %865 = vmatprep.subr.mxu0 0.0
      %866 = vmatpush1.msra.mxu0 %v845
      %867 = vmatprep.subr.mxu0 0.0
      %868 = vmatpush1.msra.mxu0 0.0
      %869 = vmatprep.subr.mxu0 0.0
      %870 = vmatpush1.msra.mxu0 0.0
      %871 = vmatprep.subr.mxu0 0.0
      %872 = vmatpush1.msra.mxu0 0.0
      %873 = vmatprep.subr.mxu0 0.0
      %874 = vmatpush1.msra.mxu0 0.0
      %875 = vmatprep.subr.mxu0 0.0
      %876 = vmatpush1.msra.mxu0 0.0
      %877 = vmatprep.subr.mxu0 0.0
      %878 = vmatpush1.msra.mxu0 0.0
      %879 = vmatprep.subr.mxu0 0.0
      %880 = vmatpush1.msra.mxu0 0.0
      %881 = vmatprep.subr.mxu0 0.0
      %882 = vmatpush1.msra.mxu0 0.0
      %883 = vmatprep.subr.mxu0 0.0
      %884 = vmatpush1.msra.mxu0 0.0
      %885 = vmatprep.subr.mxu0 0.0
      %886 = vmatpush1.msra.mxu0 0.0
      %887 = vmatprep.subr.mxu0 0.0
      %888 = vmatpush1.msra.mxu0 0.0
      %889 = vmatprep.subr.mxu0 0.0
      %890 = vmatpush1.msra.mxu0 0.0
      %891 = vmatprep.subr.mxu0 0.0
      %892 = vmatpush1.msra.mxu0 0.0
      %893 = vmatprep.subr.mxu0 0.0
      %894 = vmatpush1.msra.mxu0 0.0
      %895 = vmatprep.subr.mxu0 0.0
      %896 = vmatpush1.msra.mxu0 0.0
      %897 = vmatprep.subr.mxu0 0.0
      %898 = vmatpush1.msra.mxu0 0.0
      %899 = vmatprep.subr.mxu0 0.0
      %900 = vmatpush1.msra.mxu0 0.0
      %901 = vmatprep.subr.mxu0 0.0
      %902 = vmatpush1.msra.mxu0 0.0
      %903 = vmatprep.subr.mxu0 0.0
      %904 = vmatpush1.msra.mxu0 0.0
      %905 = vmatprep.subr.mxu0 0.0
      %906 = vmatpush1.msra.mxu0 0.0
      %907 = vmatprep.subr.mxu0 0.0
      %908 = vmatpush1.msra.mxu0 0.0
      %909 = vmatprep.subr.mxu0 0.0
      %910 = vmatpush1.msra.mxu0 0.0
      %911 = vmatprep.subr.mxu0 0.0
      %912 = vmatpush1.msra.mxu0 0.0
      %913 = vmatprep.subr.mxu0 0.0
      %914 = vmatpush1.msra.mxu0 0.0
      %915 = vmatprep.mubr.f32.mxu0 0.0
      %916 = vmatmul.mubr.f32.gmra.mrb[0].mxu0 %v849
      %v917 = vpop.f32.mrb[0].mxu0
      %v918 = vadd.f32 0.0, %v917
      %v919 = vpop.f32.mrb[0].mxu0
      %920 = vdwg.mxu0
      %vm921 = vcmask 130048
      %v923 = vsel %vm921, %v601, 0
      %925 = vmatprep.subr.mxu0 0.0
      %926 = vmatpush1.msra.mxu0 %v836
      %927 = vmatprep.subr.mxu0 0.0
      %928 = vmatpush1.msra.mxu0 %v837
      %929 = vmatprep.subr.mxu0 0.0
      %930 = vmatpush1.msra.mxu0 0.0
      %931 = vmatprep.subr.mxu0 0.0
      %932 = vmatpush1.msra.mxu0 0.0
      %933 = vmatprep.subr.mxu0 0.0
      %934 = vmatpush1.msra.mxu0 0.0
      %935 = vmatprep.subr.mxu0 0.0
      %936 = vmatpush1.msra.mxu0 0.0
      %937 = vmatprep.subr.mxu0 0.0
      %938 = vmatpush1.msra.mxu0 0.0
      %939 = vmatprep.subr.mxu0 0.0
      %940 = vmatpush1.msra.mxu0 0.0
      %941 = vmatprep.subr.mxu0 0.0
      %942 = vmatpush1.msra.mxu0 0.0
      %943 = vmatprep.subr.mxu0 0.0
      %944 = vmatpush1.msra.mxu0 0.0
      %945 = vmatprep.subr.mxu0 0.0
      %946 = vmatpush1.msra.mxu0 0.0
      %947 = vmatprep.subr.mxu0 0.0
      %948 = vmatpush1.msra.mxu0 0.0
      %949 = vmatprep.subr.mxu0 0.0
      %950 = vmatpush1.msra.mxu0 0.0
      %951 = vmatprep.subr.mxu0 0.0
      %952 = vmatpush1.msra.mxu0 0.0
      %953 = vmatprep.subr.mxu0 0.0
      %954 = vmatpush1.msra.mxu0 0.0
      %955 = vmatprep.subr.mxu0 0.0
      %956 = vmatpush1.msra.mxu0 0.0
      %957 = vmatprep.subr.mxu0 0.0
      %958 = vmatpush1.msra.mxu0 0.0
      %959 = vmatprep.subr.mxu0 0.0
      %960 = vmatpush1.msra.mxu0 0.0
      %961 = vmatprep.subr.mxu0 0.0
      %962 = vmatpush1.msra.mxu0 0.0
      %963 = vmatprep.subr.mxu0 0.0
      %964 = vmatpush1.msra.mxu0 0.0
      %965 = vmatprep.subr.mxu0 0.0
      %966 = vmatpush1.msra.mxu0 0.0
      %967 = vmatprep.subr.mxu0 0.0
      %968 = vmatpush1.msra.mxu0 0.0
      %969 = vmatprep.subr.mxu0 0.0
      %970 = vmatpush1.msra.mxu0 0.0
      %971 = vmatprep.subr.mxu0 0.0
      %972 = vmatpush1.msra.mxu0 0.0
      %973 = vmatprep.subr.mxu0 0.0
      %974 = vmatpush1.msra.mxu0 0.0
      %975 = vmatprep.subr.mxu0 0.0
      %976 = vmatpush1.msra.mxu0 0.0
      %977 = vmatprep.subr.mxu0 0.0
      %978 = vmatpush1.msra.mxu0 0.0
      %979 = vmatprep.subr.mxu0 0.0
      %980 = vmatpush1.msra.mxu0 0.0
      %981 = vmatprep.subr.mxu0 0.0
      %982 = vmatpush1.msra.mxu0 0.0
      %983 = vmatprep.subr.mxu0 0.0
      %984 = vmatpush1.msra.mxu0 0.0
      %985 = vmatprep.subr.mxu0 0.0
      %986 = vmatpush1.msra.mxu0 0.0
      %987 = vmatprep.subr.mxu0 0.0
      %988 = vmatpush1.msra.mxu0 0.0
      %989 = vmatprep.mubr.f32.mxu0 0.0
      %990 = vmatmul.mubr.f32.gmra.mrb[0].mxu0 %v923
      %v991 = vpop.f32.mrb[0].mxu0
      %v992 = vadd.f32 %v918, %v991
      %v993 = vpop.f32.mrb[0].mxu0
      %994 = vdwg.mxu0
      %v995 = vld [vmem:[%s11] sm:$0x1]
      %v997 = vlaneseq
      %v998 = vshrl.u32 %v997, 7
      %v999 = vsub.s32 0, %v998
      %v1000 = vrot.slane %v995, %v999
      %v1002 = vadd.f32 %v992, %v1000
      %v1003 = vld [vmem:[%s10] sm:$0xff]
      %v1004 = vld [vmem:[%s10 + $0x8] sm:$0xff]
      %v1005 = vld [vmem:[%s10 + $0x10] sm:$0xff]
      %v1006 = vld [vmem:[%s10 + $0x18] sm:$0xff]
      %v1007 = vld [vmem:[%s12] sm:$0x1]
      %v1009 = vlaneseq
      %v1010 = vshrl.u32 %v1009, 7
      %v1011 = vsub.s32 0, %v1010
      %v1012 = vrot.slane %v1007, %v1011
      %1014 = vmatprep.subr.mxu0 0.0
      %1015 = vmatpush1.msra.mxu0 %v1003
      %1016 = vmatprep.subr.mxu0 0.0
      %1017 = vmatpush1.msra.mxu0 %v1004
      %1018 = vmatprep.subr.mxu0 0.0
      %1019 = vmatpush1.msra.mxu0 %v1005
      %1020 = vmatprep.subr.mxu0 0.0
      %1021 = vmatpush1.msra.mxu0 %v1006
      %1022 = vmatprep.subr.mxu0 0.0
      %1023 = vmatpush1.msra.mxu0 0.0
      %1024 = vmatprep.subr.mxu0 0.0
      %1025 = vmatpush1.msra.mxu0 0.0
      %1026 = vmatprep.subr.mxu0 0.0
      %1027 = vmatpush1.msra.mxu0 0.0
      %1028 = vmatprep.subr.mxu0 0.0
      %1029 = vmatpush1.msra.mxu0 0.0
      %1030 = vmatprep.subr.mxu0 0.0
      %1031 = vmatpush1.msra.mxu0 0.0
      %1032 = vmatprep.subr.mxu0 0.0
      %1033 = vmatpush1.msra.mxu0 0.0
      %1034 = vmatprep.subr.mxu0 0.0
      %1035 = vmatpush1.msra.mxu0 0.0
      %1036 = vmatprep.subr.mxu0 0.0
      %1037 = vmatpush1.msra.mxu0 0.0
      %1038 = vmatprep.subr.mxu0 0.0
      %1039 = vmatpush1.msra.mxu0 0.0
      %1040 = vmatprep.subr.mxu0 0.0
      %1041 = vmatpush1.msra.mxu0 0.0
      %1042 = vmatprep.subr.mxu0 0.0
      %1043 = vmatpush1.msra.mxu0 0.0
      %1044 = vmatprep.subr.mxu0 0.0
      %1045 = vmatpush1.msra.mxu0 0.0
      %1046 = vmatprep.subr.mxu0 0.0
      %1047 = vmatpush1.msra.mxu0 0.0
      %1048 = vmatprep.subr.mxu0 0.0
      %1049 = vmatpush1.msra.mxu0 0.0
      %1050 = vmatprep.subr.mxu0 0.0
      %1051 = vmatpush1.msra.mxu0 0.0
      %1052 = vmatprep.subr.mxu0 0.0
      %1053 = vmatpush1.msra.mxu0 0.0
      %1054 = vmatprep.subr.mxu0 0.0
      %1055 = vmatpush1.msra.mxu0 0.0
      %1056 = vmatprep.subr.mxu0 0.0
      %1057 = vmatpush1.msra.mxu0 0.0
      %1058 = vmatprep.subr.mxu0 0.0
      %1059 = vmatpush1.msra.mxu0 0.0
      %1060 = vmatprep.subr.mxu0 0.0
      %1061 = vmatpush1.msra.mxu0 0.0
      %1062 = vmatprep.subr.mxu0 0.0
      %1063 = vmatpush1.msra.mxu0 0.0
      %1064 = vmatprep.subr.mxu0 0.0
      %1065 = vmatpush1.msra.mxu0 0.0
      %1066 = vmatprep.subr.mxu0 0.0
      %1067 = vmatpush1.msra.mxu0 0.0
      %1068 = vmatprep.subr.mxu0 0.0
      %1069 = vmatpush1.msra.mxu0 0.0
      %1070 = vmatprep.subr.mxu0 0.0
      %1071 = vmatpush1.msra.mxu0 0.0
      %1072 = vmatprep.subr.mxu0 0.0
      %1073 = vmatpush1.msra.mxu0 0.0
      %1074 = vmatprep.subr.mxu0 0.0
      %1075 = vmatpush1.msra.mxu0 0.0
      %1076 = vmatprep.subr.mxu0 0.0
      %1077 = vmatpush1.msra.mxu0 0.0
      %1078 = vmatprep.mubr.f32.mxu0 0.0
      %1079 = vmatmul.mubr.f32.gmra.mrb[0].mxu0 %v610
      %v1080 = vpop.f32.mrb[0].mxu0
      %v1081 = vadd.f32 %v1012, %v1080
      %v1082 = vpop.f32.mrb[0].mxu0
      %1083 = vdwg.mxu0
      %v1084 = vadd.f32 %v1002, %v1081
      %v1085 = vxor.u32 %v1084, 2147483648
      %v1086 = vmul.f32 %v1085, 1.442695
      %v1087 = vpow.pop %v1086
      %v1088 = vadd.f32 %v1087, 1.0
      %v1089 = vrcp.pop %v1088
      %v1090 = vmul.f32 1.0, %v1089
      %1092 = vrot.lane.b32.xlu0 %v1081, 64
      %v1093 = vpop.permute.xlu0 %1092
      %v1095 = vmul.f32 %v1090, %v1093
      %1097 = vrot.lane.b32.xlu0 %v1095, 64
      %v1098 = vpop.permute.xlu0 %1097
      %v1100 = vadd.f32 %v1002, %v1098
      %v1101 = vtanh.pop %v1100
      %v1102 = vsub.f32 1.0, %v1090
      %1104 = vrot.lane.b32.xlu0 %v1101, 96
      %v1105 = vpop.permute.xlu0 %1104
      %v1107 = vmul.f32 %v1102, %v1105
      %1108 = vrot.lane.b32.xlu0 %v516, 32
      %v1109 = vpop.permute.xlu0 %1108
      %v1111 = vmul.f32 %v1090, %v1109
      %v1112 = vadd.f32 %v1107, %v1111
      %1114 = vrot.lane.b32.xlu0 %v1112, 96
      %v1115 = vpop.permute.xlu0 %1114
      %vm1117 = vcmask 254976
      %1118 = vst.msk [vmem:[#allocation2] sm:$0x3] %vm1117, %v1115
      %v1119 = vld [vmem:[%s13] sm:$0xff]
      %v1120 = vld [vmem:[%s13 + $0x8] sm:$0xff]
      %v1121 = vld [vmem:[%s13 + $0x10] sm:$0xff]
      %v1122 = vld [vmem:[%s13 + $0x18] sm:$0xff]
      %v1123 = vld [vmem:[%s14] sm:$0xff]
      %v1124 = vld [vmem:[%s14 + $0x8] sm:$0xff]
      %v1125 = vld [vmem:[%s14 + $0x10] sm:$0xff]
      %v1126 = vld [vmem:[%s14 + $0x18] sm:$0xff]
      %v1127 = vld [vmem:[%s14 + $0x20] sm:$0xff]
      %v1128 = vld [vmem:[%s14 + $0x28] sm:$0xff]
      %v1129 = vld [vmem:[%s14 + $0x30] sm:$0xff]
      %v1130 = vld [vmem:[%s14 + $0x38] sm:$0xff]
      %1131 = vmatprep.subr.mxu0 0.0
      %1132 = vmatpush1.msra.mxu0 %v1123
      %1133 = vmatprep.subr.mxu0 0.0
      %1134 = vmatpush1.msra.mxu0 %v1124
      %1135 = vmatprep.subr.mxu0 0.0
      %1136 = vmatpush1.msra.mxu0 %v1125
      %1137 = vmatprep.subr.mxu0 0.0
      %1138 = vmatpush1.msra.mxu0 %v1126
      %1139 = vmatprep.subr.mxu0 0.0
      %1140 = vmatpush1.msra.mxu0 %v1127
      %1141 = vmatprep.subr.mxu0 0.0
      %1142 = vmatpush1.msra.mxu0 %v1128
      %1143 = vmatprep.subr.mxu0 0.0
      %1144 = vmatpush1.msra.mxu0 %v1129
      %1145 = vmatprep.subr.mxu0 0.0
      %1146 = vmatpush1.msra.mxu0 %v1130
      %1147 = vmatprep.subr.mxu0 0.0
      %1148 = vmatpush1.msra.mxu0 0.0
      %1149 = vmatprep.subr.mxu0 0.0
      %1150 = vmatpush1.msra.mxu0 0.0
      %1151 = vmatprep.subr.mxu0 0.0
      %1152 = vmatpush1.msra.mxu0 0.0
      %1153 = vmatprep.subr.mxu0 0.0
      %1154 = vmatpush1.msra.mxu0 0.0
      %1155 = vmatprep.subr.mxu0 0.0
      %1156 = vmatpush1.msra.mxu0 0.0
      %1157 = vmatprep.subr.mxu0 0.0
      %1158 = vmatpush1.msra.mxu0 0.0
      %1159 = vmatprep.subr.mxu0 0.0
      %1160 = vmatpush1.msra.mxu0 0.0
      %1161 = vmatprep.subr.mxu0 0.0
      %1162 = vmatpush1.msra.mxu0 0.0
      %1163 = vmatprep.subr.mxu0 0.0
      %1164 = vmatpush1.msra.mxu0 0.0
      %1165 = vmatprep.subr.mxu0 0.0
      %1166 = vmatpush1.msra.mxu0 0.0
      %1167 = vmatprep.subr.mxu0 0.0
      %1168 = vmatpush1.msra.mxu0 0.0
      %1169 = vmatprep.subr.mxu0 0.0
      %1170 = vmatpush1.msra.mxu0 0.0
      %1171 = vmatprep.subr.mxu0 0.0
      %1172 = vmatpush1.msra.mxu0 0.0
      %1173 = vmatprep.subr.mxu0 0.0
      %1174 = vmatpush1.msra.mxu0 0.0
      %1175 = vmatprep.subr.mxu0 0.0
      %1176 = vmatpush1.msra.mxu0 0.0
      %1177 = vmatprep.subr.mxu0 0.0
      %1178 = vmatpush1.msra.mxu0 0.0
      %1179 = vmatprep.subr.mxu0 0.0
      %1180 = vmatpush1.msra.mxu0 0.0
      %1181 = vmatprep.subr.mxu0 0.0
      %1182 = vmatpush1.msra.mxu0 0.0
      %1183 = vmatprep.subr.mxu0 0.0
      %1184 = vmatpush1.msra.mxu0 0.0
      %1185 = vmatprep.subr.mxu0 0.0
      %1186 = vmatpush1.msra.mxu0 0.0
      %1187 = vmatprep.subr.mxu0 0.0
      %1188 = vmatpush1.msra.mxu0 0.0
      %1189 = vmatprep.subr.mxu0 0.0
      %1190 = vmatpush1.msra.mxu0 0.0
      %1191 = vmatprep.subr.mxu0 0.0
      %1192 = vmatpush1.msra.mxu0 0.0
      %1193 = vmatprep.subr.mxu0 0.0
      %1194 = vmatpush1.msra.mxu0 0.0
      %1195 = vmatprep.mubr.f32.mxu0 0.0
      %1196 = vmatmul.mubr.f32.gmra.mrb[0].mxu0 %v849
      %v1197 = vpop.f32.mrb[0].mxu0
      %v1198 = vadd.f32 0.0, %v1197
      %v1199 = vpop.f32.mrb[0].mxu0
      %1200 = vdwg.mxu0
      %v1201 = vsel %vm608, %v1115, 0
      %1203 = vmatprep.subr.mxu0 0.0
      %1204 = vmatpush1.msra.mxu0 %v1119
      %1205 = vmatprep.subr.mxu0 0.0
      %1206 = vmatpush1.msra.mxu0 %v1120
      %1207 = vmatprep.subr.mxu0 0.0
      %1208 = vmatpush1.msra.mxu0 %v1121
      %1209 = vmatprep.subr.mxu0 0.0
      %1210 = vmatpush1.msra.mxu0 %v1122
      %1211 = vmatprep.subr.mxu0 0.0
      %1212 = vmatpush1.msra.mxu0 0.0
      %1213 = vmatprep.subr.mxu0 0.0
      %1214 = vmatpush1.msra.mxu0 0.0
      %1215 = vmatprep.subr.mxu0 0.0
      %1216 = vmatpush1.msra.mxu0 0.0
      %1217 = vmatprep.subr.mxu0 0.0
      %1218 = vmatpush1.msra.mxu0 0.0
      %1219 = vmatprep.subr.mxu0 0.0
      %1220 = vmatpush1.msra.mxu0 0.0
      %1221 = vmatprep.subr.mxu0 0.0
      %1222 = vmatpush1.msra.mxu0 0.0
      %1223 = vmatprep.subr.mxu0 0.0
      %1224 = vmatpush1.msra.mxu0 0.0
      %1225 = vmatprep.subr.mxu0 0.0
      %1226 = vmatpush1.msra.mxu0 0.0
      %1227 = vmatprep.subr.mxu0 0.0
      %1228 = vmatpush1.msra.mxu0 0.0
      %1229 = vmatprep.subr.mxu0 0.0
      %1230 = vmatpush1.msra.mxu0 0.0
      %1231 = vmatprep.subr.mxu0 0.0
      %1232 = vmatpush1.msra.mxu0 0.0
      %1233 = vmatprep.subr.mxu0 0.0
      %1234 = vmatpush1.msra.mxu0 0.0
      %1235 = vmatprep.subr.mxu0 0.0
      %1236 = vmatpush1.msra.mxu0 0.0
      %1237 = vmatprep.subr.mxu0 0.0
      %1238 = vmatpush1.msra.mxu0 0.0
      %1239 = vmatprep.subr.mxu0 0.0
      %1240 = vmatpush1.msra.mxu0 0.0
      %1241 = vmatprep.subr.mxu0 0.0
      %1242 = vmatpush1.msra.mxu0 0.0
      %1243 = vmatprep.subr.mxu0 0.0
      %1244 = vmatpush1.msra.mxu0 0.0
      %1245 = vmatprep.subr.mxu0 0.0
      %1246 = vmatpush1.msra.mxu0 0.0
      %1247 = vmatprep.subr.mxu0 0.0
      %1248 = vmatpush1.msra.mxu0 0.0
      %1249 = vmatprep.subr.mxu0 0.0
      %1250 = vmatpush1.msra.mxu0 0.0
      %1251 = vmatprep.subr.mxu0 0.0
      %1252 = vmatpush1.msra.mxu0 0.0
      %1253 = vmatprep.subr.mxu0 0.0
      %1254 = vmatpush1.msra.mxu0 0.0
      %1255 = vmatprep.subr.mxu0 0.0
      %1256 = vmatpush1.msra.mxu0 0.0
      %1257 = vmatprep.subr.mxu0 0.0
      %1258 = vmatpush1.msra.mxu0 0.0
      %1259 = vmatprep.subr.mxu0 0.0
      %1260 = vmatpush1.msra.mxu0 0.0
      %1261 = vmatprep.subr.mxu0 0.0
      %1262 = vmatpush1.msra.mxu0 0.0
      %1263 = vmatprep.subr.mxu0 0.0
      %1264 = vmatpush1.msra.mxu0 0.0
      %1265 = vmatprep.subr.mxu0 0.0
      %1266 = vmatpush1.msra.mxu0 0.0
      %1267 = vmatprep.mubr.f32.mxu0 0.0
      %1268 = vmatmul.mubr.f32.gmra.mrb[0].mxu0 %v1201
      %v1269 = vpop.f32.mrb[0].mxu0
      %v1270 = vadd.f32 %v1198, %v1269
      %v1271 = vpop.f32.mrb[0].mxu0
      %1272 = vdwg.mxu0
      %v1273 = vld [vmem:[%s15] sm:$0xff]
      %v1274 = vld [vmem:[%s15 + $0x8] sm:$0xff]
      %1275 = vmatprep.subr.mxu0 0.0
      %1276 = vmatpush1.msra.mxu0 %v1273
      %1277 = vmatprep.subr.mxu0 0.0
      %1278 = vmatpush1.msra.mxu0 %v1274
      %1279 = vmatprep.subr.mxu0 0.0
      %1280 = vmatpush1.msra.mxu0 0.0
      %1281 = vmatprep.subr.mxu0 0.0
      %1282 = vmatpush1.msra.mxu0 0.0
      %1283 = vmatprep.subr.mxu0 0.0
      %1284 = vmatpush1.msra.mxu0 0.0
      %1285 = vmatprep.subr.mxu0 0.0
      %1286 = vmatpush1.msra.mxu0 0.0
      %1287 = vmatprep.subr.mxu0 0.0
      %1288 = vmatpush1.msra.mxu0 0.0
      %1289 = vmatprep.subr.mxu0 0.0
      %1290 = vmatpush1.msra.mxu0 0.0
      %1291 = vmatprep.subr.mxu0 0.0
      %1292 = vmatpush1.msra.mxu0 0.0
      %1293 = vmatprep.subr.mxu0 0.0
      %1294 = vmatpush1.msra.mxu0 0.0
      %1295 = vmatprep.subr.mxu0 0.0
      %1296 = vmatpush1.msra.mxu0 0.0
      %1297 = vmatprep.subr.mxu0 0.0
      %1298 = vmatpush1.msra.mxu0 0.0
      %1299 = vmatprep.subr.mxu0 0.0
      %1300 = vmatpush1.msra.mxu0 0.0
      %1301 = vmatprep.subr.mxu0 0.0
      %1302 = vmatpush1.msra.mxu0 0.0
      %1303 = vmatprep.subr.mxu0 0.0
      %1304 = vmatpush1.msra.mxu0 0.0
      %1305 = vmatprep.subr.mxu0 0.0
      %1306 = vmatpush1.msra.mxu0 0.0
      %1307 = vmatprep.subr.mxu0 0.0
      %1308 = vmatpush1.msra.mxu0 0.0
      %1309 = vmatprep.subr.mxu0 0.0
      %1310 = vmatpush1.msra.mxu0 0.0
      %1311 = vmatprep.subr.mxu0 0.0
      %1312 = vmatpush1.msra.mxu0 0.0
      %1313 = vmatprep.subr.mxu0 0.0
      %1314 = vmatpush1.msra.mxu0 0.0
      %1315 = vmatprep.subr.mxu0 0.0
      %1316 = vmatpush1.msra.mxu0 0.0
      %1317 = vmatprep.subr.mxu0 0.0
      %1318 = vmatpush1.msra.mxu0 0.0
      %1319 = vmatprep.subr.mxu0 0.0
      %1320 = vmatpush1.msra.mxu0 0.0
      %1321 = vmatprep.subr.mxu0 0.0
      %1322 = vmatpush1.msra.mxu0 0.0
      %1323 = vmatprep.subr.mxu0 0.0
      %1324 = vmatpush1.msra.mxu0 0.0
      %1325 = vmatprep.subr.mxu0 0.0
      %1326 = vmatpush1.msra.mxu0 0.0
      %1327 = vmatprep.subr.mxu0 0.0
      %1328 = vmatpush1.msra.mxu0 0.0
      %1329 = vmatprep.subr.mxu0 0.0
      %1330 = vmatpush1.msra.mxu0 0.0
      %1331 = vmatprep.subr.mxu0 0.0
      %1332 = vmatpush1.msra.mxu0 0.0
      %1333 = vmatprep.subr.mxu0 0.0
      %1334 = vmatpush1.msra.mxu0 0.0
      %1335 = vmatprep.subr.mxu0 0.0
      %1336 = vmatpush1.msra.mxu0 0.0
      %1337 = vmatprep.subr.mxu0 0.0
      %1338 = vmatpush1.msra.mxu0 0.0
      %1339 = vmatprep.mubr.f32.mxu0 0.0
      %1340 = vmatmul.mubr.f32.gmra.mrb[0].mxu0 %v923
      %v1341 = vpop.f32.mrb[0].mxu0
      %v1342 = vadd.f32 0.0, %v1341
      %v1343 = vpop.f32.mrb[0].mxu0
      %1344 = vdwg.mxu0
      %v1345 = vadd.f32 %v1270, %v1342
      %v1346 = vld [vmem:[%s16] sm:$0x1]
      %v1348 = vlaneseq
      %v1349 = vshrl.u32 %v1348, 7
      %v1350 = vsub.s32 0, %v1349
      %v1351 = vrot.slane %v1346, %v1350
      %v1353 = vadd.f32 %v1345, %v1351
      %1354 = vst [vmem:[%s506] sm:$0x3] %v1353
      %vm1355 = vcmask 1041408
      %v1356 = vsel %vm1355, %v1353, -inf
      %1357 = vmax.xlane.f32.xlu0 %v1356
      %v1358 = vpop.xlane.xlu0 %1357
      %vm1359 = vcmp.ge.f32.partialorder %v1353, %v1358
      %v1360 = vsel %vm1359, %v739, 128
      %v1361 = vsel %vm1355, %v1360, 2147483647
      %v1362 = vand.u32 %v1361, 65535
      %v1363 = vshra.s32 %v1361, 16
      %v1364 = vcvt.s32.f32 %v1362
      %v1365 = vcvt.s32.f32 %v1363
      %1366 = vmin.xlane.f32.xlu0 %v1365
      %v1367 = vpop.xlane.xlu0 %1366
      %vm1368 = vcmp.eq.f32.partialorder %v1365, %v1367
      %v1369 = vsel %vm1368, %v1364, inf
      %1370 = vmin.xlane.f32.xlu0 %v1369
      %v1371 = vpop.xlane.xlu0 %1370
      %v1372 = vcvt.f32.s32 %v1371
      %v1373 = vcvt.f32.s32 %v1367
      %v1374 = vshll.u32 %v1373, 16
      %v1375 = vadd.s32 %v1374, %v1372
      %vm1376 = vcmp.eq.s32.totalorder %v739, %v1375
      %v1377 = vsel %vm1376, 1, 0
      %v1378 = vcvt.s32.f32 %v1377
      %s1379 = sld [smem:[#allocation5 + %s34]]
      %s1380 = scvt.s32.f32 %s1379
      %s1381 = sadd.s32 %s34, 1
      %s1382 = smul.u32 %s1381, 2
      %s1383 = scalar_lea.vmem %s1, %s1382
      %v1384 = vld [vmem:[%s1383] sm:$0x3]
      %v1385 = vstv %s1380
      %v1386 = vmul.f32 %v1385, %v1384
      %s1387 = ssub.f32 1.0, %s1380
      %v1388 = vstv %s1387
      %v1389 = vmul.f32 %v1388, %v1378
      %v1390 = vadd.f32 %v1386, %v1389
      %1391 = vst [vmem:[#allocation3] sm:$0x3] %v1390
      %p1392 = scmp.lt.s32.totalorder %s34, 6
      %s1393 = scalar_select %p1392, %s34, 6
      %s1394 = smul.addr %s1393, 2
      %s1395 = scalar_lea.vmem %s17, %s1394
      // Predicated region
      $region89: #{seq2seq_forward.3} parent=83 // pred_check
        %p1396 = pneg %p388
      $region90: #{seq2seq_forward.3} parent=83 // pred_check_branch
        %1398 = sbr.rel (%p1396) target = $region92
      $region91: #{seq2seq_forward.3} parent=83 // pred_region
        _
      $region92: #{seq2seq_forward.3} parent=83 // pred_fallthru
        _
    $region84: #{seq2seq_forward.3} parent=5 // pred_fallthru
      _
    %p1399 = scmp.le.s32.totalorder 2, %s29
    // Predicated region
    $region93: #{seq2seq_forward.3} parent=5 // pred_check
      %p1400 = pneg %p1399
    $region94: #{seq2seq_forward.3} parent=5 // pred_check_branch
      %1402 = sbr.rel (%p1400) target = $region96
    $region95: #{seq2seq_forward.3} parent=5 // pred_region
      %s1403 = ssub.s32 %s29, 2
      // Predicated region
      $region97: #{seq2seq_forward.3} parent=95 // pred_check
        %p1404 = pneg %p394
      $region98: #{seq2seq_forward.3} parent=95 // pred_check_branch
        %1406 = sbr.rel (%p1404) target = $region100
      $region99: #{seq2seq_forward.3} parent=95 // pred_region
        %p1407 = scmp.lt.s32.totalorder %s35, 6
        %s1408 = scalar_select %p1407, %s35, 6
        %s1409 = smul.addr %s1408, 2
        %s1410 = scalar_lea.vmem %s17, %s1409
      $region100: #{seq2seq_forward.3} parent=95 // pred_fallthru
        _
    $region96: #{seq2seq_forward.3} parent=5 // pred_fallthru
      _
  $region6: #{seq2seq_forward.3} parent=0 // loop_footer
    %s33 = sadd.s32 1, %s29
  $region7: #{seq2seq_forward.3} parent=0 // loop_footer_branch
    %28 = sbr.rel target = $region3
  $region8: #{seq2seq_forward.3} parent=0 // loop_exit
    _

</llo_original>
